<compile_context>
chip_gen: v6e
topology: v6e:2x2x1
jax: 0.10.0
libtpu: 0.0.40
codegen_flags: <defaults>
</compile_context>

<pallas_src>
import functools

import jax
import jax.numpy as jnp
from jax.experimental import pallas as pl
from jax.experimental.pallas import tpu as pltpu

DIM_H = 32
NUM_HEADS = 4
HEAD_DIM = DIM_H // NUM_HEADS
BN_EPS = 1e-5


# --------------------------------------------------------------------------
# Fused kernel: QKV projection + masked multi-head softmax attention
#               + output projection + residual + eval-mode BatchNorm,
#               for G graphs per grid step.
# --------------------------------------------------------------------------
def _fused_attn_kernel(h_ref, madd_ref, wqkv_ref, bqkv_ref, wo_ref, bo_ref,
                       scale_ref, o_ref, *, dim_h, num_heads):
    G, Nmax, D = h_ref.shape
    head_dim = dim_h // num_heads
    inv_sqrt_d = 1.0 / (head_dim ** 0.5)

    x = h_ref[...]                                   # (G, Nmax, D)
    xf = x.reshape(G * Nmax, D)
    mask_add = madd_ref[...]                         # (G, 1, Nmax): 0 valid, -1e9 pad

    # Fused QKV projection on the MXU for all G graphs at once.
    qkv = jnp.dot(xf, wqkv_ref[...], preferred_element_type=jnp.float32)
    qkv = qkv + bqkv_ref[...]                        # (G*Nmax, 3D)
    qkv = qkv.reshape(G, Nmax, 3 * D)

    wo = wo_ref[...]                                 # (D, D), BN-scale folded in

    # Fused epilogue accumulator:
    #   BN(h + attn) = h*scale + ctx @ (wo*scale) + (bo*scale + shift)
    acc = xf * scale_ref[...] + bo_ref[...]          # (G*Nmax, D)

    for hd in range(num_heads):                      # static, unrolled (4 heads)
        lo = hd * head_dim
        qh = qkv[:, :, lo:lo + head_dim]                                 # (G, N, Dh)
        kh = qkv[:, :, dim_h + lo:dim_h + lo + head_dim]                 # (G, N, Dh)
        vh = qkv[:, :, 2 * dim_h + lo:2 * dim_h + lo + head_dim]         # (G, N, Dh)

        s = jnp.einsum('gqd,gkd->gqk', qh, kh,
                       preferred_element_type=jnp.float32) * inv_sqrt_d  # (G, N, N)
        s = s + mask_add                                                 # key-pad mask
        s = s - jnp.max(s, axis=-1, keepdims=True)
        p = jnp.exp(s)
        p = p * pl.reciprocal(jnp.sum(p, axis=-1, keepdims=True), approx=True)
        ctx = jnp.einsum('gqk,gkd->gqd', p, vh,
                         preferred_element_type=jnp.float32)             # (G, N, Dh)

        # Per-head output projection accumulated directly (no lane-dim concat).
        acc = acc + jnp.dot(ctx.reshape(G * Nmax, head_dim),
                            wo[lo:lo + head_dim, :],
                            preferred_element_type=jnp.float32)

    o_ref[...] = acc.reshape(G, Nmax, D)


def fused_attention_batchnorm(h_dense, mask, params, *, num_heads,
                              graphs_per_block=8):
    """h_dense: (B, Nmax, D) f32; mask: (B, Nmax) f32 (1=valid node)."""
    B, Nmax, D = h_dense.shape
    G = min(graphs_per_block, B)
    B_pad = ((B + G - 1) // G) * G
    if B_pad != B:
        pad = B_pad - B
        h_dense = jnp.pad(h_dense, ((0, pad), (0, 0), (0, 0)))
        mask = jnp.pad(mask, ((0, pad), (0, 0)))

    # Additive key-padding mask precomputed outside the kernel.
    mask_add = ((mask - 1.0) * 1e9).reshape(B_pad, 1, Nmax).astype(jnp.float32)

    # Fold eval-mode BatchNorm1d into the output projection (scale/shift).
    scale = params["bn_gamma"] * jax.lax.rsqrt(params["bn_var"] + BN_EPS)  # (D,)
    shift = params["bn_beta"] - params["bn_mean"] * scale                  # (D,)
    wo_s = params["wo"] * scale[None, :]                                   # (D, D)
    bo_s = (params["bo"].reshape(-1) * scale + shift).reshape(1, D)        # (1, D)
    scale2 = scale.reshape(1, D)

    kernel = functools.partial(_fused_attn_kernel, dim_h=D, num_heads=num_heads)
    out = pl.pallas_call(
        kernel,
        out_shape=jax.ShapeDtypeStruct((B_pad, Nmax, D), jnp.float32),
        grid=(B_pad // G,),
        in_specs=[
            pl.BlockSpec((G, Nmax, D), lambda b: (b, 0, 0)),      # h_dense
            pl.BlockSpec((G, 1, Nmax), lambda b: (b, 0, 0)),      # additive mask
            pl.BlockSpec((D, 3 * D), lambda b: (0, 0)),           # wqkv
            pl.BlockSpec((1, 3 * D), lambda b: (0, 0)),           # bqkv
            pl.BlockSpec((D, D), lambda b: (0, 0)),               # wo (BN folded)
            pl.BlockSpec((1, D), lambda b: (0, 0)),               # bo (BN folded)
            pl.BlockSpec((1, D), lambda b: (0, 0)),               # BN scale (residual)
        ],
        out_specs=pl.BlockSpec((G, Nmax, D), lambda b: (b, 0, 0)),
        compiler_params=pltpu.CompilerParams(
            dimension_semantics=("parallel",)),   # megacore / multi-TC sharding
    )(h_dense, mask_add, params["wqkv"], params["bqkv"].reshape(1, 3 * D),
      wo_s, bo_s, scale2)
    return out[:B]


# --------------------------------------------------------------------------
# Glue: to_dense_joined_batch (input_stacks=1 == to_dense_batch) and wrapper.
# --------------------------------------------------------------------------
def to_dense_batch(h, batch_idx, num_graphs, max_nodes):
    """Assumes batch_idx is sorted (standard PyG contiguous batching)."""
    N, D = h.shape
    counts = jnp.bincount(batch_idx, length=num_graphs)
    offsets = jnp.concatenate([jnp.zeros((1,), jnp.int32),
                               jnp.cumsum(counts)[:-1].astype(jnp.int32)])
    pos = jnp.arange(N, dtype=jnp.int32) - offsets[batch_idx]
    h_dense = jnp.zeros((num_graphs, max_nodes, D), jnp.float32)
    h_dense = h_dense.at[batch_idx, pos].set(h)
    mask = jnp.zeros((num_graphs, max_nodes), jnp.float32)
    mask = mask.at[batch_idx, pos].set(1.0)
    return h_dense, mask, pos


def attention_layer_forward(h, batch_idx, params, *, num_graphs, max_nodes,
                            num_heads, graphs_per_block=8):
    # Pad the node-slot axis up to a sublane multiple (8) for dense vreg traffic.
    max_nodes_p = ((max_nodes + 7) // 8) * 8
    h_dense, mask, pos = to_dense_batch(h, batch_idx, num_graphs, max_nodes_p)
    # Fused attention + residual + eval-BN, computed on the padded dense layout.
    out_dense = fused_attention_batchnorm(h_dense, mask, params,
                                          num_heads=num_heads,
                                          graphs_per_block=graphs_per_block)
    # Gather real-node rows back to flat order; padded rows (garbage) discarded.
    # dropout_attn is identity (dropout=0 / eval).
    return out_dense[batch_idx, pos]


if __name__ == "__main__":
    key = jax.random.PRNGKey(0)
    k_h, k_qkv, k_bqkv, k_wo, k_bo = jax.random.split(key, 5)

    # Small graph batch: 2 graphs with 8 and 6 nodes, dim_h=32, 4 heads.
    num_graphs = 2
    node_counts = [8, 6]
    n_total = sum(node_counts)
    max_nodes = max(node_counts)

    h = jax.random.normal(k_h, (n_total, DIM_H), jnp.float32)
    batch_idx = jnp.array(sum([[g] * c for g, c in enumerate(node_counts)], []),
                          dtype=jnp.int32)

    # Deterministic parameter init (fresh-module equivalents).
    # in_proj_weight: (3D, D) in PyTorch; we store its transpose for x @ W.
    params = {
        "wqkv": 0.1 * jax.random.normal(k_qkv, (DIM_H, 3 * DIM_H), jnp.float32),
        "bqkv": 0.1 * jax.random.normal(k_bqkv, (1, 3 * DIM_H), jnp.float32),
        "wo": 0.1 * jax.random.normal(k_wo, (DIM_H, DIM_H), jnp.float32),
        "bo": 0.1 * jax.random.normal(k_bo, (1, DIM_H), jnp.float32),
        # BatchNorm1d fresh params / running stats (eval mode).
        "bn_gamma": jnp.ones((DIM_H,), jnp.float32),
        "bn_beta": jnp.zeros((DIM_H,), jnp.float32),
        "bn_mean": jnp.zeros((DIM_H,), jnp.float32),
        "bn_var": jnp.ones((DIM_H,), jnp.float32),
    }

    out = attention_layer_forward(h, batch_idx, params,
                                  num_graphs=num_graphs,
                                  max_nodes=max_nodes,
                                  num_heads=NUM_HEADS)
    out = jax.block_until_ready(out)

    # Pure-JAX f32 reference for sanity (unfused math).
    def ref_forward(h, batch_idx):
        max_nodes_p = ((max_nodes + 7) // 8) * 8
        h_dense, mask, pos = to_dense_batch(h, batch_idx, num_graphs, max_nodes_p)
        qkv = h_dense @ params["wqkv"] + params["bqkv"][0]
        q, k, v = jnp.split(qkv, 3, axis=-1)

        def split_heads(x):
            B, N, _ = x.shape
            return x.reshape(B, N, NUM_HEADS, HEAD_DIM).transpose(0, 2, 1, 3)

        qh, kh, vh = split_heads(q), split_heads(k), split_heads(v)
        s = jnp.einsum("bhqd,bhkd->bhqk", qh, kh) / (HEAD_DIM ** 0.5)
        s = s + (mask[:, None, None, :] - 1.0) * 1e9
        p = jax.nn.softmax(s, axis=-1)
        ctx = jnp.einsum("bhqk,bhkd->bhqd", p, vh)
        ctx = ctx.transpose(0, 2, 1, 3).reshape(num_graphs, max_nodes_p, DIM_H)
        attn = ctx @ params["wo"] + params["bo"][0]
        attn_flat = attn[batch_idx, pos]
        x = h + attn_flat
        return (x - params["bn_mean"]) / jnp.sqrt(params["bn_var"] + BN_EPS) \
            * params["bn_gamma"] + params["bn_beta"]

    ref = ref_forward(h, batch_idx)
    assert out.shape == (n_total, DIM_H)
    # Tolerance loosened slightly (1e-3) to cover pl.reciprocal(approx=True).
    assert jnp.allclose(out, ref, atol=1e-3, rtol=1e-3), (
        "mismatch vs reference: max abs err = "
        f"{float(jnp.max(jnp.abs(out - ref)))}")

    print("KERNEL_OK")
</pallas_src>

<mosaic_0001>
module attributes {stable_mosaic.version = 11 : i64} {
  func.func @_fused_attn_kernel(%arg0: i32, %arg1: memref<2x8x32xf32, #tpu.memory_space<vmem>>, %arg2: memref<2x1x8xf32, #tpu.memory_space<vmem>>, %arg3: memref<32x96xf32, #tpu.memory_space<vmem>>, %arg4: memref<1x96xf32, #tpu.memory_space<vmem>>, %arg5: memref<32x32xf32, #tpu.memory_space<vmem>>, %arg6: memref<1x32xf32, #tpu.memory_space<vmem>>, %arg7: memref<1x32xf32, #tpu.memory_space<vmem>>, %arg8: memref<2x8x32xf32, #tpu.memory_space<vmem>>) attributes {dimension_semantics = [#tpu.dimension_semantics<parallel>], iteration_bounds = array<i64: 1>, scalar_prefetch = 0 : i64, scratch_operands = 0 : i64, tpu.core_type = #tpu.core_type<tc>, window_params = [{transform_indices = @transform_0, window_bounds = array<i64: 2, 8, 32>}, {transform_indices = @transform_1, window_bounds = array<i64: 2, 1, 8>}, {pipeline_mode = #tpu.pipeline_mode<synchronous>, transform_indices = @transform_2, window_bounds = array<i64: 32, 96>}, {pipeline_mode = #tpu.pipeline_mode<synchronous>, transform_indices = @transform_3, window_bounds = array<i64: 1, 96>}, {pipeline_mode = #tpu.pipeline_mode<synchronous>, transform_indices = @transform_4, window_bounds = array<i64: 32, 32>}, {pipeline_mode = #tpu.pipeline_mode<synchronous>, transform_indices = @transform_5, window_bounds = array<i64: 1, 32>}, {pipeline_mode = #tpu.pipeline_mode<synchronous>, transform_indices = @transform_6, window_bounds = array<i64: 1, 32>}, {transform_indices = @transform_7, window_bounds = array<i64: 2, 8, 32>}]} {
    %c0 = arith.constant 0 : index
    %c0_0 = arith.constant 0 : index
    %c0_1 = arith.constant 0 : index
    %0 = vector.load %arg1[%c0, %c0_0, %c0_1] : memref<2x8x32xf32, #tpu.memory_space<vmem>>, vector<2x8x32xf32>
    %1 = vector.shape_cast %0 : vector<2x8x32xf32> to vector<16x32xf32>
    %c0_2 = arith.constant 0 : index
    %c0_3 = arith.constant 0 : index
    %c0_4 = arith.constant 0 : index
    %2 = vector.load %arg2[%c0_2, %c0_3, %c0_4] : memref<2x1x8xf32, #tpu.memory_space<vmem>>, vector<2x1x8xf32>
    %c0_5 = arith.constant 0 : index
    %c0_6 = arith.constant 0 : index
    %3 = vector.load %arg3[%c0_5, %c0_6] : memref<32x96xf32, #tpu.memory_space<vmem>>, vector<32x96xf32>
    %cst = arith.constant dense<0.000000e+00> : vector<16x96xf32>
    %4 = tpu.matmul %1, %3, %cst {dimension_numbers = #tpu.dot_dimension_numbers<[1], [0], [0], [1], [0, 0, 1, 1], [], []>} : vector<16x32xf32>, vector<32x96xf32>, vector<16x96xf32> -> vector<16x96xf32>
    %c0_7 = arith.constant 0 : index
    %c0_8 = arith.constant 0 : index
    %5 = vector.load %arg4[%c0_7, %c0_8] : memref<1x96xf32, #tpu.memory_space<vmem>>, vector<1x96xf32>
    %6 = vector.broadcast %5 : vector<1x96xf32> to vector<16x96xf32>
    %7 = arith.addf %4, %6 : vector<16x96xf32>
    %8 = vector.shape_cast %7 : vector<16x96xf32> to vector<2x8x96xf32>
    %c0_9 = arith.constant 0 : index
    %c0_10 = arith.constant 0 : index
    %9 = vector.load %arg5[%c0_9, %c0_10] : memref<32x32xf32, #tpu.memory_space<vmem>>, vector<32x32xf32>
    %c0_11 = arith.constant 0 : index
    %c0_12 = arith.constant 0 : index
    %10 = vector.load %arg7[%c0_11, %c0_12] : memref<1x32xf32, #tpu.memory_space<vmem>>, vector<1x32xf32>
    %11 = vector.broadcast %10 : vector<1x32xf32> to vector<16x32xf32>
    %12 = arith.mulf %1, %11 : vector<16x32xf32>
    %c0_13 = arith.constant 0 : index
    %c0_14 = arith.constant 0 : index
    %13 = vector.load %arg6[%c0_13, %c0_14] : memref<1x32xf32, #tpu.memory_space<vmem>>, vector<1x32xf32>
    %14 = vector.broadcast %13 : vector<1x32xf32> to vector<16x32xf32>
    %15 = arith.addf %12, %14 : vector<16x32xf32>
    %16 = vector.extract_strided_slice %8 {offsets = [0, 0, 0], sizes = [2, 8, 8], strides = [1, 1, 1]} : vector<2x8x96xf32> to vector<2x8x8xf32>
    %17 = vector.extract_strided_slice %8 {offsets = [0, 0, 32], sizes = [2, 8, 8], strides = [1, 1, 1]} : vector<2x8x96xf32> to vector<2x8x8xf32>
    %18 = vector.extract_strided_slice %8 {offsets = [0, 0, 64], sizes = [2, 8, 8], strides = [1, 1, 1]} : vector<2x8x96xf32> to vector<2x8x8xf32>
    "tpu.trace_start"() <{level = 10 : i32, message = "gqd,gkd->gqk"}> : () -> ()
    %cst_15 = arith.constant dense<0.000000e+00> : vector<2x8x8xf32>
    %19 = tpu.matmul %16, %17, %cst_15 {dimension_numbers = #tpu.dot_dimension_numbers<[2], [2], [1], [1], [0, 0, 0, 1, 1, 1], [0], [0]>} : vector<2x8x8xf32>, vector<2x8x8xf32>, vector<2x8x8xf32> -> vector<2x8x8xf32>
    "tpu.trace_stop"() : () -> ()
    %cst_16 = arith.constant 0.353553385 : f32
    %20 = vector.broadcast %cst_16 : f32 to vector<2x8x8xf32>
    %21 = arith.mulf %19, %20 : vector<2x8x8xf32>
    %22 = vector.broadcast %2 : vector<2x1x8xf32> to vector<2x8x8xf32>
    %23 = arith.addf %21, %22 : vector<2x8x8xf32>
    %cst_17 = arith.constant dense<0xFF800000> : vector<2x8xf32>
    %24 = vector.multi_reduction <maximumf>, %23, %cst_17 [2] : vector<2x8x8xf32> to vector<2x8xf32>
    %25 = vector.shape_cast %24 : vector<2x8xf32> to vector<2x8x1xf32>
    %26 = vector.broadcast %25 : vector<2x8x1xf32> to vector<2x8x8xf32>
    %27 = arith.subf %23, %26 : vector<2x8x8xf32>
    %28 = math.exp %27 : vector<2x8x8xf32>
    %cst_18 = arith.constant dense<0.000000e+00> : vector<2x8xf32>
    %29 = vector.multi_reduction <add>, %28, %cst_18 [2] : vector<2x8x8xf32> to vector<2x8xf32>
    %30 = vector.shape_cast %29 : vector<2x8xf32> to vector<2x8x1xf32>
    %31 = tpu.reciprocal %30 {approx = true} : vector<2x8x1xf32> -> vector<2x8x1xf32>
    %32 = vector.broadcast %31 : vector<2x8x1xf32> to vector<2x8x8xf32>
    %33 = arith.mulf %28, %32 : vector<2x8x8xf32>
    "tpu.trace_start"() <{level = 10 : i32, message = "gqk,gkd->gqd"}> : () -> ()
    %cst_19 = arith.constant dense<0.000000e+00> : vector<2x8x8xf32>
    %34 = tpu.matmul %33, %18, %cst_19 {dimension_numbers = #tpu.dot_dimension_numbers<[2], [1], [1], [2], [0, 0, 0, 1, 1, 2], [0], [0]>} : vector<2x8x8xf32>, vector<2x8x8xf32>, vector<2x8x8xf32> -> vector<2x8x8xf32>
    "tpu.trace_stop"() : () -> ()
    %35 = vector.shape_cast %34 : vector<2x8x8xf32> to vector<16x8xf32>
    %36 = vector.extract_strided_slice %9 {offsets = [0, 0], sizes = [8, 32], strides = [1, 1]} : vector<32x32xf32> to vector<8x32xf32>
    %cst_20 = arith.constant dense<0.000000e+00> : vector<16x32xf32>
    %37 = tpu.matmul %35, %36, %cst_20 {dimension_numbers = #tpu.dot_dimension_numbers<[1], [0], [0], [1], [0, 0, 1, 1], [], []>} : vector<16x8xf32>, vector<8x32xf32>, vector<16x32xf32> -> vector<16x32xf32>
    %38 = arith.addf %15, %37 : vector<16x32xf32>
    %39 = vector.extract_strided_slice %8 {offsets = [0, 0, 8], sizes = [2, 8, 8], strides = [1, 1, 1]} : vector<2x8x96xf32> to vector<2x8x8xf32>
    %40 = vector.extract_strided_slice %8 {offsets = [0, 0, 40], sizes = [2, 8, 8], strides = [1, 1, 1]} : vector<2x8x96xf32> to vector<2x8x8xf32>
    %41 = vector.extract_strided_slice %8 {offsets = [0, 0, 72], sizes = [2, 8, 8], strides = [1, 1, 1]} : vector<2x8x96xf32> to vector<2x8x8xf32>
    "tpu.trace_start"() <{level = 10 : i32, message = "gqd,gkd->gqk"}> : () -> ()
    %cst_21 = arith.constant dense<0.000000e+00> : vector<2x8x8xf32>
    %42 = tpu.matmul %39, %40, %cst_21 {dimension_numbers = #tpu.dot_dimension_numbers<[2], [2], [1], [1], [0, 0, 0, 1, 1, 1], [0], [0]>} : vector<2x8x8xf32>, vector<2x8x8xf32>, vector<2x8x8xf32> -> vector<2x8x8xf32>
    "tpu.trace_stop"() : () -> ()
    %cst_22 = arith.constant 0.353553385 : f32
    %43 = vector.broadcast %cst_22 : f32 to vector<2x8x8xf32>
    %44 = arith.mulf %42, %43 : vector<2x8x8xf32>
    %45 = vector.broadcast %2 : vector<2x1x8xf32> to vector<2x8x8xf32>
    %46 = arith.addf %44, %45 : vector<2x8x8xf32>
    %cst_23 = arith.constant dense<0xFF800000> : vector<2x8xf32>
    %47 = vector.multi_reduction <maximumf>, %46, %cst_23 [2] : vector<2x8x8xf32> to vector<2x8xf32>
    %48 = vector.shape_cast %47 : vector<2x8xf32> to vector<2x8x1xf32>
    %49 = vector.broadcast %48 : vector<2x8x1xf32> to vector<2x8x8xf32>
    %50 = arith.subf %46, %49 : vector<2x8x8xf32>
    %51 = math.exp %50 : vector<2x8x8xf32>
    %cst_24 = arith.constant dense<0.000000e+00> : vector<2x8xf32>
    %52 = vector.multi_reduction <add>, %51, %cst_24 [2] : vector<2x8x8xf32> to vector<2x8xf32>
    %53 = vector.shape_cast %52 : vector<2x8xf32> to vector<2x8x1xf32>
    %54 = tpu.reciprocal %53 {approx = true} : vector<2x8x1xf32> -> vector<2x8x1xf32>
    %55 = vector.broadcast %54 : vector<2x8x1xf32> to vector<2x8x8xf32>
    %56 = arith.mulf %51, %55 : vector<2x8x8xf32>
    "tpu.trace_start"() <{level = 10 : i32, message = "gqk,gkd->gqd"}> : () -> ()
    %cst_25 = arith.constant dense<0.000000e+00> : vector<2x8x8xf32>
    %57 = tpu.matmul %56, %41, %cst_25 {dimension_numbers = #tpu.dot_dimension_numbers<[2], [1], [1], [2], [0, 0, 0, 1, 1, 2], [0], [0]>} : vector<2x8x8xf32>, vector<2x8x8xf32>, vector<2x8x8xf32> -> vector<2x8x8xf32>
    "tpu.trace_stop"() : () -> ()
    %58 = vector.shape_cast %57 : vector<2x8x8xf32> to vector<16x8xf32>
    %59 = vector.extract_strided_slice %9 {offsets = [8, 0], sizes = [8, 32], strides = [1, 1]} : vector<32x32xf32> to vector<8x32xf32>
    %cst_26 = arith.constant dense<0.000000e+00> : vector<16x32xf32>
    %60 = tpu.matmul %58, %59, %cst_26 {dimension_numbers = #tpu.dot_dimension_numbers<[1], [0], [0], [1], [0, 0, 1, 1], [], []>} : vector<16x8xf32>, vector<8x32xf32>, vector<16x32xf32> -> vector<16x32xf32>
    %61 = arith.addf %38, %60 : vector<16x32xf32>
    %62 = vector.extract_strided_slice %8 {offsets = [0, 0, 16], sizes = [2, 8, 8], strides = [1, 1, 1]} : vector<2x8x96xf32> to vector<2x8x8xf32>
    %63 = vector.extract_strided_slice %8 {offsets = [0, 0, 48], sizes = [2, 8, 8], strides = [1, 1, 1]} : vector<2x8x96xf32> to vector<2x8x8xf32>
    %64 = vector.extract_strided_slice %8 {offsets = [0, 0, 80], sizes = [2, 8, 8], strides = [1, 1, 1]} : vector<2x8x96xf32> to vector<2x8x8xf32>
    "tpu.trace_start"() <{level = 10 : i32, message = "gqd,gkd->gqk"}> : () -> ()
    %cst_27 = arith.constant dense<0.000000e+00> : vector<2x8x8xf32>
    %65 = tpu.matmul %62, %63, %cst_27 {dimension_numbers = #tpu.dot_dimension_numbers<[2], [2], [1], [1], [0, 0, 0, 1, 1, 1], [0], [0]>} : vector<2x8x8xf32>, vector<2x8x8xf32>, vector<2x8x8xf32> -> vector<2x8x8xf32>
    "tpu.trace_stop"() : () -> ()
    %cst_28 = arith.constant 0.353553385 : f32
    %66 = vector.broadcast %cst_28 : f32 to vector<2x8x8xf32>
    %67 = arith.mulf %65, %66 : vector<2x8x8xf32>
    %68 = vector.broadcast %2 : vector<2x1x8xf32> to vector<2x8x8xf32>
    %69 = arith.addf %67, %68 : vector<2x8x8xf32>
    %cst_29 = arith.constant dense<0xFF800000> : vector<2x8xf32>
    %70 = vector.multi_reduction <maximumf>, %69, %cst_29 [2] : vector<2x8x8xf32> to vector<2x8xf32>
    %71 = vector.shape_cast %70 : vector<2x8xf32> to vector<2x8x1xf32>
    %72 = vector.broadcast %71 : vector<2x8x1xf32> to vector<2x8x8xf32>
    %73 = arith.subf %69, %72 : vector<2x8x8xf32>
    %74 = math.exp %73 : vector<2x8x8xf32>
    %cst_30 = arith.constant dense<0.000000e+00> : vector<2x8xf32>
    %75 = vector.multi_reduction <add>, %74, %cst_30 [2] : vector<2x8x8xf32> to vector<2x8xf32>
    %76 = vector.shape_cast %75 : vector<2x8xf32> to vector<2x8x1xf32>
    %77 = tpu.reciprocal %76 {approx = true} : vector<2x8x1xf32> -> vector<2x8x1xf32>
    %78 = vector.broadcast %77 : vector<2x8x1xf32> to vector<2x8x8xf32>
    %79 = arith.mulf %74, %78 : vector<2x8x8xf32>
    "tpu.trace_start"() <{level = 10 : i32, message = "gqk,gkd->gqd"}> : () -> ()
    %cst_31 = arith.constant dense<0.000000e+00> : vector<2x8x8xf32>
    %80 = tpu.matmul %79, %64, %cst_31 {dimension_numbers = #tpu.dot_dimension_numbers<[2], [1], [1], [2], [0, 0, 0, 1, 1, 2], [0], [0]>} : vector<2x8x8xf32>, vector<2x8x8xf32>, vector<2x8x8xf32> -> vector<2x8x8xf32>
    "tpu.trace_stop"() : () -> ()
    %81 = vector.shape_cast %80 : vector<2x8x8xf32> to vector<16x8xf32>
    %82 = vector.extract_strided_slice %9 {offsets = [16, 0], sizes = [8, 32], strides = [1, 1]} : vector<32x32xf32> to vector<8x32xf32>
    %cst_32 = arith.constant dense<0.000000e+00> : vector<16x32xf32>
    %83 = tpu.matmul %81, %82, %cst_32 {dimension_numbers = #tpu.dot_dimension_numbers<[1], [0], [0], [1], [0, 0, 1, 1], [], []>} : vector<16x8xf32>, vector<8x32xf32>, vector<16x32xf32> -> vector<16x32xf32>
    %84 = arith.addf %61, %83 : vector<16x32xf32>
    %85 = vector.extract_strided_slice %8 {offsets = [0, 0, 24], sizes = [2, 8, 8], strides = [1, 1, 1]} : vector<2x8x96xf32> to vector<2x8x8xf32>
    %86 = vector.extract_strided_slice %8 {offsets = [0, 0, 56], sizes = [2, 8, 8], strides = [1, 1, 1]} : vector<2x8x96xf32> to vector<2x8x8xf32>
    %87 = vector.extract_strided_slice %8 {offsets = [0, 0, 88], sizes = [2, 8, 8], strides = [1, 1, 1]} : vector<2x8x96xf32> to vector<2x8x8xf32>
    "tpu.trace_start"() <{level = 10 : i32, message = "gqd,gkd->gqk"}> : () -> ()
    %cst_33 = arith.constant dense<0.000000e+00> : vector<2x8x8xf32>
    %88 = tpu.matmul %85, %86, %cst_33 {dimension_numbers = #tpu.dot_dimension_numbers<[2], [2], [1], [1], [0, 0, 0, 1, 1, 1], [0], [0]>} : vector<2x8x8xf32>, vector<2x8x8xf32>, vector<2x8x8xf32> -> vector<2x8x8xf32>
    "tpu.trace_stop"() : () -> ()
    %cst_34 = arith.constant 0.353553385 : f32
    %89 = vector.broadcast %cst_34 : f32 to vector<2x8x8xf32>
    %90 = arith.mulf %88, %89 : vector<2x8x8xf32>
    %91 = vector.broadcast %2 : vector<2x1x8xf32> to vector<2x8x8xf32>
    %92 = arith.addf %90, %91 : vector<2x8x8xf32>
    %cst_35 = arith.constant dense<0xFF800000> : vector<2x8xf32>
    %93 = vector.multi_reduction <maximumf>, %92, %cst_35 [2] : vector<2x8x8xf32> to vector<2x8xf32>
    %94 = vector.shape_cast %93 : vector<2x8xf32> to vector<2x8x1xf32>
    %95 = vector.broadcast %94 : vector<2x8x1xf32> to vector<2x8x8xf32>
    %96 = arith.subf %92, %95 : vector<2x8x8xf32>
    %97 = math.exp %96 : vector<2x8x8xf32>
    %cst_36 = arith.constant dense<0.000000e+00> : vector<2x8xf32>
    %98 = vector.multi_reduction <add>, %97, %cst_36 [2] : vector<2x8x8xf32> to vector<2x8xf32>
    %99 = vector.shape_cast %98 : vector<2x8xf32> to vector<2x8x1xf32>
    %100 = tpu.reciprocal %99 {approx = true} : vector<2x8x1xf32> -> vector<2x8x1xf32>
    %101 = vector.broadcast %100 : vector<2x8x1xf32> to vector<2x8x8xf32>
    %102 = arith.mulf %97, %101 : vector<2x8x8xf32>
    "tpu.trace_start"() <{level = 10 : i32, message = "gqk,gkd->gqd"}> : () -> ()
    %cst_37 = arith.constant dense<0.000000e+00> : vector<2x8x8xf32>
    %103 = tpu.matmul %102, %87, %cst_37 {dimension_numbers = #tpu.dot_dimension_numbers<[2], [1], [1], [2], [0, 0, 0, 1, 1, 2], [0], [0]>} : vector<2x8x8xf32>, vector<2x8x8xf32>, vector<2x8x8xf32> -> vector<2x8x8xf32>
    "tpu.trace_stop"() : () -> ()
    %104 = vector.shape_cast %103 : vector<2x8x8xf32> to vector<16x8xf32>
    %105 = vector.extract_strided_slice %9 {offsets = [24, 0], sizes = [8, 32], strides = [1, 1]} : vector<32x32xf32> to vector<8x32xf32>
    %cst_38 = arith.constant dense<0.000000e+00> : vector<16x32xf32>
    %106 = tpu.matmul %104, %105, %cst_38 {dimension_numbers = #tpu.dot_dimension_numbers<[1], [0], [0], [1], [0, 0, 1, 1], [], []>} : vector<16x8xf32>, vector<8x32xf32>, vector<16x32xf32> -> vector<16x32xf32>
    %107 = arith.addf %84, %106 : vector<16x32xf32>
    %108 = vector.shape_cast %107 : vector<16x32xf32> to vector<2x8x32xf32>
    %c0_39 = arith.constant 0 : index
    %c0_40 = arith.constant 0 : index
    %c0_41 = arith.constant 0 : index
    %109 = vector.load %arg8[%c0_39, %c0_40, %c0_41] : memref<2x8x32xf32, #tpu.memory_space<vmem>>, vector<2x8x32xf32>
    tpu.vector_store %arg8[%c0_39, %c0_40, %c0_41], %108 {strides = array<i32>} : memref<2x8x32xf32, #tpu.memory_space<vmem>>, vector<2x8x32xf32>,
    return
  }
  func.func @transform_0(%arg0: i32) -> (i32, i32, i32) {
    %c0_i32 = arith.constant 0 : i32
    %c0_i32_0 = arith.constant 0 : i32
    %c0_i32_1 = arith.constant 0 : i32
    return %arg0, %c0_i32, %c0_i32_0 : i32, i32, i32
  }
  func.func @transform_1(%arg0: i32) -> (i32, i32, i32) {
    %c0_i32 = arith.constant 0 : i32
    %c0_i32_0 = arith.constant 0 : i32
    %c0_i32_1 = arith.constant 0 : i32
    return %arg0, %c0_i32, %c0_i32_0 : i32, i32, i32
  }
  func.func @transform_2(%arg0: i32) -> (i32, i32) {
    %c0_i32 = arith.constant 0 : i32
    %c0_i32_0 = arith.constant 0 : i32
    %c0_i32_1 = arith.constant 0 : i32
    return %c0_i32, %c0_i32_0 : i32, i32
  }
  func.func @transform_3(%arg0: i32) -> (i32, i32) {
    %c0_i32 = arith.constant 0 : i32
    %c0_i32_0 = arith.constant 0 : i32
    %c0_i32_1 = arith.constant 0 : i32
    return %c0_i32, %c0_i32_0 : i32, i32
  }
  func.func @transform_4(%arg0: i32) -> (i32, i32) {
    %c0_i32 = arith.constant 0 : i32
    %c0_i32_0 = arith.constant 0 : i32
    %c0_i32_1 = arith.constant 0 : i32
    return %c0_i32, %c0_i32_0 : i32, i32
  }
  func.func @transform_5(%arg0: i32) -> (i32, i32) {
    %c0_i32 = arith.constant 0 : i32
    %c0_i32_0 = arith.constant 0 : i32
    %c0_i32_1 = arith.constant 0 : i32
    return %c0_i32, %c0_i32_0 : i32, i32
  }
  func.func @transform_6(%arg0: i32) -> (i32, i32) {
    %c0_i32 = arith.constant 0 : i32
    %c0_i32_0 = arith.constant 0 : i32
    %c0_i32_1 = arith.constant 0 : i32
    return %c0_i32, %c0_i32_0 : i32, i32
  }
  func.func @transform_7(%arg0: i32) -> (i32, i32, i32) {
    %c0_i32 = arith.constant 0 : i32
    %c0_i32_0 = arith.constant 0 : i32
    %c0_i32_1 = arith.constant 0 : i32
    return %arg0, %c0_i32, %c0_i32_0 : i32, i32, i32
  }
}

</mosaic_0001>

<llo_original>
// kernel: tpu_custom_call.1
$region0: #{tpu_custom_call.1}
  #allocation0 [shape = 'u32[]', space=smem, size = 0x4, offset = 0x4, fixed_abs, tag = 'smem constant byte address 0x4 - core index']
  #allocation1 [shape = 'u32[144,128]{1,0:T(1,128)}', space=vmem, size = 0x12000, scoped, tag = 'internal scratch']
  %s0 = inlined_call_operand.hbm [shape: f32[2,8,32], index: 0, kind: input, shape index: {}]
  %s1 = inlined_call_operand.hbm [shape: f32[2,1,8], index: 1, kind: input, shape index: {}]
  %s2 = inlined_call_operand.hbm [shape: f32[32,96], index: 2, kind: input, shape index: {}]
  %s3 = inlined_call_operand.vmem [shape: f32[1,96], index: 3, kind: input, shape index: {}]
  %s4 = inlined_call_operand.hbm [shape: f32[32,32], index: 4, kind: input, shape index: {}]
  %s5 = inlined_call_operand.vmem [shape: f32[1,32], index: 5, kind: input, shape index: {}]
  %s6 = inlined_call_operand.vmem [shape: f32[1,32], index: 6, kind: input, shape index: {}]
  %s7 = inlined_call_operand.hbm [shape: f32[2,8,32], index: 7, kind: output, shape index: {}]
  %s8 = sld [smem:[#allocation0]]
  $region54: #{tpu_custom_call.1} parent=0
    _
  %s10 = ssub.s32 1, %s8
  %s11 = scalar_select 0, %s10, %s8
  $region1: #{tpu_custom_call.1} parent=0
    #allocation2 [shape = 'u8[8192]{0}', space=vmem, size = 0x2000, scoped, tag = 'input window, operand 0, single buffered']
    #allocation3 [shape = 's32[1]{0}', space=sflag, size = 0x4, scoped, tag = 'scoped memory for tpu_custom_call.1']
    #allocation4 [shape = 's32[1]{0}', space=sflag, size = 0x4, scoped, tag = 'scoped memory for tpu_custom_call.1']
    #allocation5 [shape = 'u8[1024]{0}', space=vmem, size = 0x400, scoped, tag = 'input window, operand 1, single buffered']
    #allocation6 [shape = 's32[1]{0}', space=sflag, size = 0x4, scoped, tag = 'scoped memory for tpu_custom_call.1']
    #allocation7 [shape = 'u8[16384]{0}', space=vmem, size = 0x4000, scoped, tag = 'input window, operand 2, single buffered']
    #allocation8 [shape = 'u8[16384]{0}', space=vmem, size = 0x4000, scoped, tag = 'input window, operand 4, single buffered']
    #allocation9 [shape = 's32[1]{0}', space=sflag, size = 0x4, scoped, tag = 'scoped memory for tpu_custom_call.1']
    #allocation10 [shape = 'u8[8192]{0}', space=vmem, size = 0x2000, scoped, tag = 'output window, operand 0, single buffered']
    %12 = vsyncpa [#allocation3], 0
    %13 = vsyncpa [#allocation6], 0
    %14 = vsyncpa [#allocation9], 0
    %15 = vsyncpa [#allocation4], 0
    // Predicated region
    $region2: #{tpu_custom_call.1} parent=1 // pred_check
      _
    $region3: #{tpu_custom_call.1} parent=1 // pred_check_branch
      %17 = sbr.rel (0) target = $region5
    $region4: #{tpu_custom_call.1} parent=1 // pred_region
      %s19 = ssub.s32 256, 256
      %20 = vsyncadd [#allocation3], %s19
      %s21 = sshll.u32 [#allocation2], 4
      %s22 = int_to_ptr.vmem [resolvable:$true] %s21
      %27 = dma.hbm_to_vmem [thread:$0]  %s0, 256, %s22, [#allocation3], 128, 128, 8
    $region5: #{tpu_custom_call.1} parent=1 // pred_fallthru
      _
    // Predicated region
    $region6: #{tpu_custom_call.1} parent=1 // pred_check
      _
    $region7: #{tpu_custom_call.1} parent=1 // pred_check_branch
      %29 = sbr.rel (0) target = $region9
    $region8: #{tpu_custom_call.1} parent=1 // pred_region
      %s31 = ssub.s32 32, 32
      %32 = vsyncadd [#allocation6], %s31
      %s33 = sshll.u32 [#allocation5], 4
      %s34 = int_to_ptr.vmem [resolvable:$true] %s33
      %39 = dma.hbm_to_vmem [thread:$0]  %s1, 32, %s34, [#allocation6], 16, 16, 1
    $region9: #{tpu_custom_call.1} parent=1 // pred_fallthru
      _
    // Predicated region
    $region10: #{tpu_custom_call.1} parent=1 // pred_check
      _
    $region11: #{tpu_custom_call.1} parent=1 // pred_check_branch
      %41 = sbr.rel (0) target = $region13
    $region12: #{tpu_custom_call.1} parent=1 // pred_region
      %s43 = ssub.s32 512, 512
      %44 = vsyncadd [#allocation6], %s43
      %s45 = sshll.u32 [#allocation7], 4
      %s46 = int_to_ptr.vmem [resolvable:$true] %s45
      %51 = dma.hbm_to_vmem [thread:$0]  %s2, 512, %s46, [#allocation6], 128, 128, 8
    $region13: #{tpu_custom_call.1} parent=1 // pred_fallthru
      _
    // Predicated region
    $region14: #{tpu_custom_call.1} parent=1 // pred_check
      _
    $region15: #{tpu_custom_call.1} parent=1 // pred_check_branch
      %53 = sbr.rel (0) target = $region17
    $region16: #{tpu_custom_call.1} parent=1 // pred_region
      _
    $region17: #{tpu_custom_call.1} parent=1 // pred_fallthru
      _
    // Predicated region
    $region18: #{tpu_custom_call.1} parent=1 // pred_check
      _
    $region19: #{tpu_custom_call.1} parent=1 // pred_check_branch
      %55 = sbr.rel (0) target = $region21
    $region20: #{tpu_custom_call.1} parent=1 // pred_region
      %s57 = ssub.s32 512, 512
      %58 = vsyncadd [#allocation9], %s57
      %s59 = sshll.u32 [#allocation8], 4
      %s60 = int_to_ptr.vmem [resolvable:$true] %s59
      %65 = dma.hbm_to_vmem [thread:$0]  %s4, 512, %s60, [#allocation9], 128, 128, 8
    $region21: #{tpu_custom_call.1} parent=1 // pred_fallthru
      _
    // Predicated region
    $region22: #{tpu_custom_call.1} parent=1 // pred_check
      _
    $region23: #{tpu_custom_call.1} parent=1 // pred_check_branch
      %67 = sbr.rel (0) target = $region25
    $region24: #{tpu_custom_call.1} parent=1 // pred_region
      _
    $region25: #{tpu_custom_call.1} parent=1 // pred_fallthru
      _
    // Predicated region
    $region26: #{tpu_custom_call.1} parent=1 // pred_check
      _
    $region27: #{tpu_custom_call.1} parent=1 // pred_check_branch
      %69 = sbr.rel (0) target = $region29
    $region28: #{tpu_custom_call.1} parent=1 // pred_region
      _
    $region29: #{tpu_custom_call.1} parent=1 // pred_fallthru
      _
    // Predicated region
    $region30: #{tpu_custom_call.1} parent=1 // pred_check
      _
    $region31: #{tpu_custom_call.1} parent=1 // pred_check_branch
      %71 = sbr.rel (0) target = $region33
    $region32: #{tpu_custom_call.1} parent=1 // pred_region
      %72 = dma.done [#allocation3], 256
    $region33: #{tpu_custom_call.1} parent=1 // pred_fallthru
      _
    // Predicated region
    $region34: #{tpu_custom_call.1} parent=1 // pred_check
      _
    $region35: #{tpu_custom_call.1} parent=1 // pred_check_branch
      %74 = sbr.rel (0) target = $region37
    $region36: #{tpu_custom_call.1} parent=1 // pred_region
      %75 = dma.done [#allocation6], 32
    $region37: #{tpu_custom_call.1} parent=1 // pred_fallthru
      _
    // Predicated region
    $region38: #{tpu_custom_call.1} parent=1 // pred_check
      _
    $region39: #{tpu_custom_call.1} parent=1 // pred_check_branch
      %77 = sbr.rel (0) target = $region41
    $region40: #{tpu_custom_call.1} parent=1 // pred_region
      %78 = dma.done [#allocation6], 512
    $region41: #{tpu_custom_call.1} parent=1 // pred_fallthru
      _
    // Predicated region
    $region42: #{tpu_custom_call.1} parent=1 // pred_check
      _
    $region43: #{tpu_custom_call.1} parent=1 // pred_check_branch
      %80 = sbr.rel (0) target = $region45
    $region44: #{tpu_custom_call.1} parent=1 // pred_region
      %81 = dma.done [#allocation9], 512
    $region45: #{tpu_custom_call.1} parent=1 // pred_fallthru
      _
    %v82 = vld [vmem:[#allocation2] sm:$0xff]
    %v83 = vld [vmem:[#allocation2 + $0x8] sm:$0xff]
    %v84 = vld [vmem:[#allocation5] sm:$0x1]
    %v85 = vld [vmem:[#allocation5 + $0x1] sm:$0x1]
    %v86 = vld [vmem:[#allocation7] sm:$0xff]
    %v87 = vld [vmem:[#allocation7 + $0x8] sm:$0xff]
    %v88 = vld [vmem:[#allocation7 + $0x10] sm:$0xff]
    %v89 = vld [vmem:[#allocation7 + $0x18] sm:$0xff]
    %v90 = vld [vmem:[%s3] sm:$0x1]
    %v92 = vlaneseq
    %v93 = vshrl.u32 %v92, 7
    %v94 = vsub.s32 0, %v93
    %v95 = vrot.slane %v90, %v94
    %vm97 = vcmask 261120
    %v99 = vsel %vm97, %v82, 0
    %v102 = vsel %vm97, %v83, 0
    %104 = vmatprep.subr.mxu0 0.0
    %105 = vmatpush1.msra.mxu0 0.0
    %106 = vmatprep.subr.mxu0 0.0
    %107 = vmatpush1.msra.mxu0 0.0
    %108 = vmatprep.subr.mxu0 0.0
    %109 = vmatpush1.msra.mxu0 0.0
    %110 = vmatprep.subr.mxu0 0.0
    %111 = vmatpush1.msra.mxu0 0.0
    %112 = vmatprep.subr.mxu0 0.0
    %113 = vmatpush1.msra.mxu0 0.0
    %114 = vmatprep.subr.mxu0 0.0
    %115 = vmatpush1.msra.mxu0 0.0
    %116 = vmatprep.subr.mxu0 0.0
    %117 = vmatpush1.msra.mxu0 0.0
    %118 = vmatprep.subr.mxu0 0.0
    %119 = vmatpush1.msra.mxu0 0.0
    %120 = vmatprep.subr.mxu0 0.0
    %121 = vmatpush1.msra.mxu0 0.0
    %122 = vmatprep.subr.mxu0 0.0
    %123 = vmatpush1.msra.mxu0 0.0
    %124 = vmatprep.subr.mxu0 0.0
    %125 = vmatpush1.msra.mxu0 0.0
    %126 = vmatprep.subr.mxu0 0.0
    %127 = vmatpush1.msra.mxu0 0.0
    %128 = vmatprep.subr.mxu0 0.0
    %129 = vmatpush1.msra.mxu0 %v89
    %130 = vmatprep.subr.mxu0 0.0
    %131 = vmatpush1.msra.mxu0 %v88
    %132 = vmatprep.subr.mxu0 0.0
    %133 = vmatpush1.msra.mxu0 %v87
    %134 = vmatprep.subr.mxu0 0.0
    %135 = vmatpush1.msra.mxu0 %v86
    %136 = vmatprep.subr.mxu0 0.0
    %137 = vmatpush2.msra.mxu0 0.0
    %138 = vmatprep.subr.mxu0 0.0
    %139 = vmatpush2.msra.mxu0 0.0
    %140 = vmatprep.subr.mxu0 0.0
    %141 = vmatpush2.msra.mxu0 0.0
    %142 = vmatprep.subr.mxu0 0.0
    %143 = vmatpush2.msra.mxu0 0.0
    %144 = vmatprep.subr.mxu0 0.0
    %145 = vmatpush2.msra.mxu0 0.0
    %146 = vmatprep.subr.mxu0 0.0
    %147 = vmatpush2.msra.mxu0 0.0
    %148 = vmatprep.subr.mxu0 0.0
    %149 = vmatpush2.msra.mxu0 0.0
    %150 = vmatprep.subr.mxu0 0.0
    %151 = vmatpush2.msra.mxu0 0.0
    %152 = vmatprep.subr.mxu0 0.0
    %153 = vmatpush2.msra.mxu0 0.0
    %154 = vmatprep.subr.mxu0 0.0
    %155 = vmatpush2.msra.mxu0 0.0
    %156 = vmatprep.subr.mxu0 0.0
    %157 = vmatpush2.msra.mxu0 0.0
    %158 = vmatprep.subr.mxu0 0.0
    %159 = vmatpush2.msra.mxu0 0.0
    %160 = vmatprep.subr.mxu0 0.0
    %161 = vmatpush2.msra.mxu0 0.0
    %162 = vmatprep.subr.mxu0 0.0
    %163 = vmatpush2.msra.mxu0 0.0
    %164 = vmatprep.subr.mxu0 0.0
    %165 = vmatpush2.msra.mxu0 0.0
    %166 = vmatprep.subr.mxu0 0.0
    %167 = vmatpush2.msra.mxu0 0.0
    %168 = vmatprep.mubr.f32.mxu0 0.0
    %169 = vmatmul.mubr.f32.gmra.mxu0 %v99
    %v170 = vpop.f32.mrf.mxu0
    %v171 = vadd.f32 %v95, %v170
    %v172 = vpop.f32.mrf.mxu0
    %173 = vmatprep.mubr.f32.mxu0 0.0
    %174 = vmatmul.mubr.f32.gmra.mxu0 %v102
    %v175 = vpop.f32.mrf.mxu0
    %v176 = vadd.f32 %v95, %v175
    %v177 = vpop.f32.mrf.mxu0
    %178 = vdwg.mxu0
    %v179 = vld [vmem:[#allocation8] sm:$0xff]
    %v180 = vld [vmem:[#allocation8 + $0x8] sm:$0xff]
    %v181 = vld [vmem:[#allocation8 + $0x10] sm:$0xff]
    %v182 = vld [vmem:[#allocation8 + $0x18] sm:$0xff]
    %v183 = vld [vmem:[%s6] sm:$0x1]
    %v185 = vlaneseq
    %v186 = vshrl.u32 %v185, 7
    %v187 = vsub.s32 0, %v186
    %v188 = vrot.slane %v183, %v187
    %v190 = vmul.f32 %v82, %v188
    %v191 = vmul.f32 %v83, %v188
    %v192 = vld [vmem:[%s5] sm:$0x1]
    %v194 = vlaneseq
    %v195 = vshrl.u32 %v194, 7
    %v196 = vsub.s32 0, %v195
    %v197 = vrot.slane %v192, %v196
    %v199 = vadd.f32 %v190, %v197
    %v200 = vadd.f32 %v191, %v197
    %202 = vrot.lane.b32.xlu0 %v171, 96
    %v203 = vpop.permute.xlu0 %202
    %vm204 = vcmask 64512
    %v205 = vsel %vm204, %v171, 0
    %v207 = vsel %vm204, %v203, 0
    %209 = vmatprep.subr.mxu0 0.0
    %210 = vmatpush1.xpose.msra.mxu0 0.0
    %211 = vmatprep.subr.mxu0 0.0
    %212 = vmatpush1.xpose.msra.mxu0 0.0
    %213 = vmatprep.subr.mxu0 0.0
    %214 = vmatpush1.xpose.msra.mxu0 0.0
    %215 = vmatprep.subr.mxu0 0.0
    %216 = vmatpush1.xpose.msra.mxu0 0.0
    %217 = vmatprep.subr.mxu0 0.0
    %218 = vmatpush1.xpose.msra.mxu0 0.0
    %219 = vmatprep.subr.mxu0 0.0
    %220 = vmatpush1.xpose.msra.mxu0 0.0
    %221 = vmatprep.subr.mxu0 0.0
    %222 = vmatpush1.xpose.msra.mxu0 0.0
    %223 = vmatprep.subr.mxu0 0.0
    %224 = vmatpush1.xpose.msra.mxu0 0.0
    %225 = vmatprep.subr.mxu0 0.0
    %226 = vmatpush1.xpose.msra.mxu0 0.0
    %227 = vmatprep.subr.mxu0 0.0
    %228 = vmatpush1.xpose.msra.mxu0 0.0
    %229 = vmatprep.subr.mxu0 0.0
    %230 = vmatpush1.xpose.msra.mxu0 0.0
    %231 = vmatprep.subr.mxu0 0.0
    %232 = vmatpush1.xpose.msra.mxu0 0.0
    %233 = vmatprep.subr.mxu0 0.0
    %234 = vmatpush1.xpose.msra.mxu0 0.0
    %235 = vmatprep.subr.mxu0 0.0
    %236 = vmatpush1.xpose.msra.mxu0 0.0
    %237 = vmatprep.subr.mxu0 0.0
    %238 = vmatpush1.xpose.msra.mxu0 0.0
    %239 = vmatprep.subr.mxu0 0.0
    %240 = vmatpush1.xpose.msra.mxu0 %v207
    %241 = vmatprep.subr.mxu0 0.0
    %242 = vmatpush2.xpose.msra.mxu0 0.0
    %243 = vmatprep.subr.mxu0 0.0
    %244 = vmatpush2.xpose.msra.mxu0 0.0
    %245 = vmatprep.subr.mxu0 0.0
    %246 = vmatpush2.xpose.msra.mxu0 0.0
    %247 = vmatprep.subr.mxu0 0.0
    %248 = vmatpush2.xpose.msra.mxu0 0.0
    %249 = vmatprep.subr.mxu0 0.0
    %250 = vmatpush2.xpose.msra.mxu0 0.0
    %251 = vmatprep.subr.mxu0 0.0
    %252 = vmatpush2.xpose.msra.mxu0 0.0
    %253 = vmatprep.subr.mxu0 0.0
    %254 = vmatpush2.xpose.msra.mxu0 0.0
    %255 = vmatprep.subr.mxu0 0.0
    %256 = vmatpush2.xpose.msra.mxu0 0.0
    %257 = vmatprep.subr.mxu0 0.0
    %258 = vmatpush2.xpose.msra.mxu0 0.0
    %259 = vmatprep.subr.mxu0 0.0
    %260 = vmatpush2.xpose.msra.mxu0 0.0
    %261 = vmatprep.subr.mxu0 0.0
    %262 = vmatpush2.xpose.msra.mxu0 0.0
    %263 = vmatprep.subr.mxu0 0.0
    %264 = vmatpush2.xpose.msra.mxu0 0.0
    %265 = vmatprep.subr.mxu0 0.0
    %266 = vmatpush2.xpose.msra.mxu0 0.0
    %267 = vmatprep.subr.mxu0 0.0
    %268 = vmatpush2.xpose.msra.mxu0 0.0
    %269 = vmatprep.subr.mxu0 0.0
    %270 = vmatpush2.xpose.msra.mxu0 0.0
    %271 = vmatprep.subr.mxu0 0.0
    %272 = vmatpush2.xpose.msra.mxu0 0.0
    %273 = vmatprep.mubr.f32.mxu0 0.0
    %274 = vmatmul.mubr.f32.gmra.mxu0 %v205
    %v275 = vpop.f32.mrf.mxu0
    %v276 = vadd.f32 0.0, %v275
    %v277 = vpop.f32.mrf.mxu0
    %278 = vdwg.mxu0
    %280 = vrot.lane.b32.xlu0 %v176, 96
    %v281 = vpop.permute.xlu0 %280
    %v282 = vsel %vm204, %v176, 0
    %v284 = vsel %vm204, %v281, 0
    %286 = vmatprep.subr.mxu0 0.0
    %287 = vmatpush1.xpose.msra.mxu0 0.0
    %288 = vmatprep.subr.mxu0 0.0
    %289 = vmatpush1.xpose.msra.mxu0 0.0
    %290 = vmatprep.subr.mxu0 0.0
    %291 = vmatpush1.xpose.msra.mxu0 0.0
    %292 = vmatprep.subr.mxu0 0.0
    %293 = vmatpush1.xpose.msra.mxu0 0.0
    %294 = vmatprep.subr.mxu0 0.0
    %295 = vmatpush1.xpose.msra.mxu0 0.0
    %296 = vmatprep.subr.mxu0 0.0
    %297 = vmatpush1.xpose.msra.mxu0 0.0
    %298 = vmatprep.subr.mxu0 0.0
    %299 = vmatpush1.xpose.msra.mxu0 0.0
    %300 = vmatprep.subr.mxu0 0.0
    %301 = vmatpush1.xpose.msra.mxu0 0.0
    %302 = vmatprep.subr.mxu0 0.0
    %303 = vmatpush1.xpose.msra.mxu0 0.0
    %304 = vmatprep.subr.mxu0 0.0
    %305 = vmatpush1.xpose.msra.mxu0 0.0
    %306 = vmatprep.subr.mxu0 0.0
    %307 = vmatpush1.xpose.msra.mxu0 0.0
    %308 = vmatprep.subr.mxu0 0.0
    %309 = vmatpush1.xpose.msra.mxu0 0.0
    %310 = vmatprep.subr.mxu0 0.0
    %311 = vmatpush1.xpose.msra.mxu0 0.0
    %312 = vmatprep.subr.mxu0 0.0
    %313 = vmatpush1.xpose.msra.mxu0 0.0
    %314 = vmatprep.subr.mxu0 0.0
    %315 = vmatpush1.xpose.msra.mxu0 0.0
    %316 = vmatprep.subr.mxu0 0.0
    %317 = vmatpush1.xpose.msra.mxu0 %v284
    %318 = vmatprep.subr.mxu0 0.0
    %319 = vmatpush2.xpose.msra.mxu0 0.0
    %320 = vmatprep.subr.mxu0 0.0
    %321 = vmatpush2.xpose.msra.mxu0 0.0
    %322 = vmatprep.subr.mxu0 0.0
    %323 = vmatpush2.xpose.msra.mxu0 0.0
    %324 = vmatprep.subr.mxu0 0.0
    %325 = vmatpush2.xpose.msra.mxu0 0.0
    %326 = vmatprep.subr.mxu0 0.0
    %327 = vmatpush2.xpose.msra.mxu0 0.0
    %328 = vmatprep.subr.mxu0 0.0
    %329 = vmatpush2.xpose.msra.mxu0 0.0
    %330 = vmatprep.subr.mxu0 0.0
    %331 = vmatpush2.xpose.msra.mxu0 0.0
    %332 = vmatprep.subr.mxu0 0.0
    %333 = vmatpush2.xpose.msra.mxu0 0.0
    %334 = vmatprep.subr.mxu0 0.0
    %335 = vmatpush2.xpose.msra.mxu0 0.0
    %336 = vmatprep.subr.mxu0 0.0
    %337 = vmatpush2.xpose.msra.mxu0 0.0
    %338 = vmatprep.subr.mxu0 0.0
    %339 = vmatpush2.xpose.msra.mxu0 0.0
    %340 = vmatprep.subr.mxu0 0.0
    %341 = vmatpush2.xpose.msra.mxu0 0.0
    %342 = vmatprep.subr.mxu0 0.0
    %343 = vmatpush2.xpose.msra.mxu0 0.0
    %344 = vmatprep.subr.mxu0 0.0
    %345 = vmatpush2.xpose.msra.mxu0 0.0
    %346 = vmatprep.subr.mxu0 0.0
    %347 = vmatpush2.xpose.msra.mxu0 0.0
    %348 = vmatprep.subr.mxu0 0.0
    %349 = vmatpush2.xpose.msra.mxu0 0.0
    %350 = vmatprep.mubr.f32.mxu0 0.0
    %351 = vmatmul.mubr.f32.gmra.mxu0 %v282
    %v352 = vpop.f32.mrf.mxu0
    %v353 = vadd.f32 0.0, %v352
    %v354 = vpop.f32.mrf.mxu0
    %355 = vdwg.mxu0
    %v356 = vmul.f32 %v276, 0.35355338
    %v357 = vmul.f32 %v353, 0.35355338
    %v360 = vlaneseq
    %v361 = vshrl.u32 %v360, 7
    %v362 = vsub.s32 0, %v361
    %v363 = vrot.slane %v84, %v362
    %v364 = vlaneseq
    %v365 = vshrl.u32 %v364, 7
    %v366 = vsub.s32 0, %v365
    %v367 = vrot.slane %v85, %v366
    %v370 = vadd.f32 %v356, %v363
    %v371 = vadd.f32 %v357, %v367
    %v372 = vsel %vm204, %v370, -inf
    %373 = vmax.xlane.f32.xlu0 %v372
    %v374 = vpop.xlane.xlu0 %373
    %v375 = vsel %vm204, %v371, -inf
    %376 = vmax.xlane.f32.xlu0 %v375
    %v377 = vpop.xlane.xlu0 %376
    %v378 = vsub.f32 %v370, %v374
    %v379 = vsub.f32 %v371, %v377
    %v380 = vmul.f32 %v378, 1.442695
    %v381 = vpow.pop %v380
    %v382 = vmul.f32 %v379, 1.442695
    %v383 = vpow.pop %v382
    %v384 = vsel %vm204, %v381, 0.0
    %385 = vadd.xlane.f32.xlu0 %v384
    %v386 = vpop.xlane.xlu0 %385
    %v387 = vsel %vm204, %v383, 0.0
    %388 = vadd.xlane.f32.xlu0 %v387
    %v389 = vpop.xlane.xlu0 %388
    %v390 = vrcp.pop %v386
    %v391 = vrcp.pop %v389
    %v392 = vmul.f32 %v381, %v390
    %v393 = vmul.f32 %v383, %v391
    %394 = vrot.lane.b32.xlu0 %v171, 64
    %v395 = vpop.permute.xlu0 %394
    %v398 = vsel %vm204, %v392, 0
    %400 = vmatprep.subr.mxu0 0.0
    %401 = vmatpush1.msra.mxu0 0.0
    %402 = vmatprep.subr.mxu0 0.0
    %403 = vmatpush1.msra.mxu0 0.0
    %404 = vmatprep.subr.mxu0 0.0
    %405 = vmatpush1.msra.mxu0 0.0
    %406 = vmatprep.subr.mxu0 0.0
    %407 = vmatpush1.msra.mxu0 0.0
    %408 = vmatprep.subr.mxu0 0.0
    %409 = vmatpush1.msra.mxu0 0.0
    %410 = vmatprep.subr.mxu0 0.0
    %411 = vmatpush1.msra.mxu0 0.0
    %412 = vmatprep.subr.mxu0 0.0
    %413 = vmatpush1.msra.mxu0 0.0
    %414 = vmatprep.subr.mxu0 0.0
    %415 = vmatpush1.msra.mxu0 0.0
    %416 = vmatprep.subr.mxu0 0.0
    %417 = vmatpush1.msra.mxu0 0.0
    %418 = vmatprep.subr.mxu0 0.0
    %419 = vmatpush1.msra.mxu0 0.0
    %420 = vmatprep.subr.mxu0 0.0
    %421 = vmatpush1.msra.mxu0 0.0
    %422 = vmatprep.subr.mxu0 0.0
    %423 = vmatpush1.msra.mxu0 0.0
    %424 = vmatprep.subr.mxu0 0.0
    %425 = vmatpush1.msra.mxu0 0.0
    %426 = vmatprep.subr.mxu0 0.0
    %427 = vmatpush1.msra.mxu0 0.0
    %428 = vmatprep.subr.mxu0 0.0
    %429 = vmatpush1.msra.mxu0 0.0
    %430 = vmatprep.subr.mxu0 0.0
    %431 = vmatpush1.msra.mxu0 %v395
    %432 = vmatprep.subr.mxu0 0.0
    %433 = vmatpush2.msra.mxu0 0.0
    %434 = vmatprep.subr.mxu0 0.0
    %435 = vmatpush2.msra.mxu0 0.0
    %436 = vmatprep.subr.mxu0 0.0
    %437 = vmatpush2.msra.mxu0 0.0
    %438 = vmatprep.subr.mxu0 0.0
    %439 = vmatpush2.msra.mxu0 0.0
    %440 = vmatprep.subr.mxu0 0.0
    %441 = vmatpush2.msra.mxu0 0.0
    %442 = vmatprep.subr.mxu0 0.0
    %443 = vmatpush2.msra.mxu0 0.0
    %444 = vmatprep.subr.mxu0 0.0
    %445 = vmatpush2.msra.mxu0 0.0
    %446 = vmatprep.subr.mxu0 0.0
    %447 = vmatpush2.msra.mxu0 0.0
    %448 = vmatprep.subr.mxu0 0.0
    %449 = vmatpush2.msra.mxu0 0.0
    %450 = vmatprep.subr.mxu0 0.0
    %451 = vmatpush2.msra.mxu0 0.0
    %452 = vmatprep.subr.mxu0 0.0
    %453 = vmatpush2.msra.mxu0 0.0
    %454 = vmatprep.subr.mxu0 0.0
    %455 = vmatpush2.msra.mxu0 0.0
    %456 = vmatprep.subr.mxu0 0.0
    %457 = vmatpush2.msra.mxu0 0.0
    %458 = vmatprep.subr.mxu0 0.0
    %459 = vmatpush2.msra.mxu0 0.0
    %460 = vmatprep.subr.mxu0 0.0
    %461 = vmatpush2.msra.mxu0 0.0
    %462 = vmatprep.subr.mxu0 0.0
    %463 = vmatpush2.msra.mxu0 0.0
    %464 = vmatprep.mubr.f32.mxu0 0.0
    %465 = vmatmul.mubr.f32.gmra.mxu0 %v398
    %v466 = vpop.f32.mrf.mxu0
    %v467 = vadd.f32 0.0, %v466
    %v468 = vpop.f32.mrf.mxu0
    %469 = vdwg.mxu0
    %470 = vrot.lane.b32.xlu0 %v176, 64
    %v471 = vpop.permute.xlu0 %470
    %v474 = vsel %vm204, %v393, 0
    %476 = vmatprep.subr.mxu0 0.0
    %477 = vmatpush1.msra.mxu0 0.0
    %478 = vmatprep.subr.mxu0 0.0
    %479 = vmatpush1.msra.mxu0 0.0
    %480 = vmatprep.subr.mxu0 0.0
    %481 = vmatpush1.msra.mxu0 0.0
    %482 = vmatprep.subr.mxu0 0.0
    %483 = vmatpush1.msra.mxu0 0.0
    %484 = vmatprep.subr.mxu0 0.0
    %485 = vmatpush1.msra.mxu0 0.0
    %486 = vmatprep.subr.mxu0 0.0
    %487 = vmatpush1.msra.mxu0 0.0
    %488 = vmatprep.subr.mxu0 0.0
    %489 = vmatpush1.msra.mxu0 0.0
    %490 = vmatprep.subr.mxu0 0.0
    %491 = vmatpush1.msra.mxu0 0.0
    %492 = vmatprep.subr.mxu0 0.0
    %493 = vmatpush1.msra.mxu0 0.0
    %494 = vmatprep.subr.mxu0 0.0
    %495 = vmatpush1.msra.mxu0 0.0
    %496 = vmatprep.subr.mxu0 0.0
    %497 = vmatpush1.msra.mxu0 0.0
    %498 = vmatprep.subr.mxu0 0.0
    %499 = vmatpush1.msra.mxu0 0.0
    %500 = vmatprep.subr.mxu0 0.0
    %501 = vmatpush1.msra.mxu0 0.0
    %502 = vmatprep.subr.mxu0 0.0
    %503 = vmatpush1.msra.mxu0 0.0
    %504 = vmatprep.subr.mxu0 0.0
    %505 = vmatpush1.msra.mxu0 0.0
    %506 = vmatprep.subr.mxu0 0.0
    %507 = vmatpush1.msra.mxu0 %v471
    %508 = vmatprep.subr.mxu0 0.0
    %509 = vmatpush2.msra.mxu0 0.0
    %510 = vmatprep.subr.mxu0 0.0
    %511 = vmatpush2.msra.mxu0 0.0
    %512 = vmatprep.subr.mxu0 0.0
    %513 = vmatpush2.msra.mxu0 0.0
    %514 = vmatprep.subr.mxu0 0.0
    %515 = vmatpush2.msra.mxu0 0.0
    %516 = vmatprep.subr.mxu0 0.0
    %517 = vmatpush2.msra.mxu0 0.0
    %518 = vmatprep.subr.mxu0 0.0
    %519 = vmatpush2.msra.mxu0 0.0
    %520 = vmatprep.subr.mxu0 0.0
    %521 = vmatpush2.msra.mxu0 0.0
    %522 = vmatprep.subr.mxu0 0.0
    %523 = vmatpush2.msra.mxu0 0.0
    %524 = vmatprep.subr.mxu0 0.0
    %525 = vmatpush2.msra.mxu0 0.0
    %526 = vmatprep.subr.mxu0 0.0
    %527 = vmatpush2.msra.mxu0 0.0
    %528 = vmatprep.subr.mxu0 0.0
    %529 = vmatpush2.msra.mxu0 0.0
    %530 = vmatprep.subr.mxu0 0.0
    %531 = vmatpush2.msra.mxu0 0.0
    %532 = vmatprep.subr.mxu0 0.0
    %533 = vmatpush2.msra.mxu0 0.0
    %534 = vmatprep.subr.mxu0 0.0
    %535 = vmatpush2.msra.mxu0 0.0
    %536 = vmatprep.subr.mxu0 0.0
    %537 = vmatpush2.msra.mxu0 0.0
    %538 = vmatprep.subr.mxu0 0.0
    %539 = vmatpush2.msra.mxu0 0.0
    %540 = vmatprep.mubr.f32.mxu0 0.0
    %541 = vmatmul.mubr.f32.gmra.mxu0 %v474
    %v542 = vpop.f32.mrf.mxu0
    %v543 = vadd.f32 0.0, %v542
    %v544 = vpop.f32.mrf.mxu0
    %545 = vdwg.mxu0
    %v547 = vsel %vm204, %v467, 0
    %v550 = vsel %vm204, %v543, 0
    %552 = vmatprep.subr.mxu0 0.0
    %553 = vmatpush1.msra.mxu0 0.0
    %554 = vmatprep.subr.mxu0 0.0
    %555 = vmatpush1.msra.mxu0 0.0
    %556 = vmatprep.subr.mxu0 0.0
    %557 = vmatpush1.msra.mxu0 0.0
    %558 = vmatprep.subr.mxu0 0.0
    %559 = vmatpush1.msra.mxu0 0.0
    %560 = vmatprep.subr.mxu0 0.0
    %561 = vmatpush1.msra.mxu0 0.0
    %562 = vmatprep.subr.mxu0 0.0
    %563 = vmatpush1.msra.mxu0 0.0
    %564 = vmatprep.subr.mxu0 0.0
    %565 = vmatpush1.msra.mxu0 0.0
    %566 = vmatprep.subr.mxu0 0.0
    %567 = vmatpush1.msra.mxu0 0.0
    %568 = vmatprep.subr.mxu0 0.0
    %569 = vmatpush1.msra.mxu0 0.0
    %570 = vmatprep.subr.mxu0 0.0
    %571 = vmatpush1.msra.mxu0 0.0
    %572 = vmatprep.subr.mxu0 0.0
    %573 = vmatpush1.msra.mxu0 0.0
    %574 = vmatprep.subr.mxu0 0.0
    %575 = vmatpush1.msra.mxu0 0.0
    %576 = vmatprep.subr.mxu0 0.0
    %577 = vmatpush1.msra.mxu0 0.0
    %578 = vmatprep.subr.mxu0 0.0
    %579 = vmatpush1.msra.mxu0 0.0
    %580 = vmatprep.subr.mxu0 0.0
    %581 = vmatpush1.msra.mxu0 0.0
    %582 = vmatprep.subr.mxu0 0.0
    %583 = vmatpush1.msra.mxu0 %v179
    %584 = vmatprep.subr.mxu0 0.0
    %585 = vmatpush2.msra.mxu0 0.0
    %586 = vmatprep.subr.mxu0 0.0
    %587 = vmatpush2.msra.mxu0 0.0
    %588 = vmatprep.subr.mxu0 0.0
    %589 = vmatpush2.msra.mxu0 0.0
    %590 = vmatprep.subr.mxu0 0.0
    %591 = vmatpush2.msra.mxu0 0.0
    %592 = vmatprep.subr.mxu0 0.0
    %593 = vmatpush2.msra.mxu0 0.0
    %594 = vmatprep.subr.mxu0 0.0
    %595 = vmatpush2.msra.mxu0 0.0
    %596 = vmatprep.subr.mxu0 0.0
    %597 = vmatpush2.msra.mxu0 0.0
    %598 = vmatprep.subr.mxu0 0.0
    %599 = vmatpush2.msra.mxu0 0.0
    %600 = vmatprep.subr.mxu0 0.0
    %601 = vmatpush2.msra.mxu0 0.0
    %602 = vmatprep.subr.mxu0 0.0
    %603 = vmatpush2.msra.mxu0 0.0
    %604 = vmatprep.subr.mxu0 0.0
    %605 = vmatpush2.msra.mxu0 0.0
    %606 = vmatprep.subr.mxu0 0.0
    %607 = vmatpush2.msra.mxu0 0.0
    %608 = vmatprep.subr.mxu0 0.0
    %609 = vmatpush2.msra.mxu0 0.0
    %610 = vmatprep.subr.mxu0 0.0
    %611 = vmatpush2.msra.mxu0 0.0
    %612 = vmatprep.subr.mxu0 0.0
    %613 = vmatpush2.msra.mxu0 0.0
    %614 = vmatprep.subr.mxu0 0.0
    %615 = vmatpush2.msra.mxu0 0.0
    %616 = vmatprep.mubr.f32.mxu0 0.0
    %617 = vmatmul.mubr.f32.gmra.mxu0 %v547
    %v618 = vpop.f32.mrf.mxu0
    %v619 = vadd.f32 0.0, %v618
    %v620 = vpop.f32.mrf.mxu0
    %621 = vmatprep.mubr.f32.mxu0 0.0
    %622 = vmatmul.mubr.f32.gmra.mxu0 %v550
    %v623 = vpop.f32.mrf.mxu0
    %v624 = vadd.f32 0.0, %v623
    %v625 = vpop.f32.mrf.mxu0
    %626 = vdwg.mxu0
    %v627 = vadd.f32 %v199, %v619
    %v628 = vadd.f32 %v200, %v624
    %629 = vrot.lane.b32.xlu0 %v171, 120
    %v630 = vpop.permute.xlu0 %629
    %631 = vrot.lane.b32.xlu0 %v171, 88
    %v632 = vpop.permute.xlu0 %631
    %v633 = vsel %vm204, %v630, 0
    %v635 = vsel %vm204, %v632, 0
    %637 = vmatprep.subr.mxu0 0.0
    %638 = vmatpush1.xpose.msra.mxu0 0.0
    %639 = vmatprep.subr.mxu0 0.0
    %640 = vmatpush1.xpose.msra.mxu0 0.0
    %641 = vmatprep.subr.mxu0 0.0
    %642 = vmatpush1.xpose.msra.mxu0 0.0
    %643 = vmatprep.subr.mxu0 0.0
    %644 = vmatpush1.xpose.msra.mxu0 0.0
    %645 = vmatprep.subr.mxu0 0.0
    %646 = vmatpush1.xpose.msra.mxu0 0.0
    %647 = vmatprep.subr.mxu0 0.0
    %648 = vmatpush1.xpose.msra.mxu0 0.0
    %649 = vmatprep.subr.mxu0 0.0
    %650 = vmatpush1.xpose.msra.mxu0 0.0
    %651 = vmatprep.subr.mxu0 0.0
    %652 = vmatpush1.xpose.msra.mxu0 0.0
    %653 = vmatprep.subr.mxu0 0.0
    %654 = vmatpush1.xpose.msra.mxu0 0.0
    %655 = vmatprep.subr.mxu0 0.0
    %656 = vmatpush1.xpose.msra.mxu0 0.0
    %657 = vmatprep.subr.mxu0 0.0
    %658 = vmatpush1.xpose.msra.mxu0 0.0
    %659 = vmatprep.subr.mxu0 0.0
    %660 = vmatpush1.xpose.msra.mxu0 0.0
    %661 = vmatprep.subr.mxu0 0.0
    %662 = vmatpush1.xpose.msra.mxu0 0.0
    %663 = vmatprep.subr.mxu0 0.0
    %664 = vmatpush1.xpose.msra.mxu0 0.0
    %665 = vmatprep.subr.mxu0 0.0
    %666 = vmatpush1.xpose.msra.mxu0 0.0
    %667 = vmatprep.subr.mxu0 0.0
    %668 = vmatpush1.xpose.msra.mxu0 %v635
    %669 = vmatprep.subr.mxu0 0.0
    %670 = vmatpush2.xpose.msra.mxu0 0.0
    %671 = vmatprep.subr.mxu0 0.0
    %672 = vmatpush2.xpose.msra.mxu0 0.0
    %673 = vmatprep.subr.mxu0 0.0
    %674 = vmatpush2.xpose.msra.mxu0 0.0
    %675 = vmatprep.subr.mxu0 0.0
    %676 = vmatpush2.xpose.msra.mxu0 0.0
    %677 = vmatprep.subr.mxu0 0.0
    %678 = vmatpush2.xpose.msra.mxu0 0.0
    %679 = vmatprep.subr.mxu0 0.0
    %680 = vmatpush2.xpose.msra.mxu0 0.0
    %681 = vmatprep.subr.mxu0 0.0
    %682 = vmatpush2.xpose.msra.mxu0 0.0
    %683 = vmatprep.subr.mxu0 0.0
    %684 = vmatpush2.xpose.msra.mxu0 0.0
    %685 = vmatprep.subr.mxu0 0.0
    %686 = vmatpush2.xpose.msra.mxu0 0.0
    %687 = vmatprep.subr.mxu0 0.0
    %688 = vmatpush2.xpose.msra.mxu0 0.0
    %689 = vmatprep.subr.mxu0 0.0
    %690 = vmatpush2.xpose.msra.mxu0 0.0
    %691 = vmatprep.subr.mxu0 0.0
    %692 = vmatpush2.xpose.msra.mxu0 0.0
    %693 = vmatprep.subr.mxu0 0.0
    %694 = vmatpush2.xpose.msra.mxu0 0.0
    %695 = vmatprep.subr.mxu0 0.0
    %696 = vmatpush2.xpose.msra.mxu0 0.0
    %697 = vmatprep.subr.mxu0 0.0
    %698 = vmatpush2.xpose.msra.mxu0 0.0
    %699 = vmatprep.subr.mxu0 0.0
    %700 = vmatpush2.xpose.msra.mxu0 0.0
    %701 = vmatprep.mubr.f32.mxu0 0.0
    %702 = vmatmul.mubr.f32.gmra.mxu0 %v633
    %v703 = vpop.f32.mrf.mxu0
    %v704 = vadd.f32 0.0, %v703
    %v705 = vpop.f32.mrf.mxu0
    %706 = vdwg.mxu0
    %707 = vrot.lane.b32.xlu0 %v176, 120
    %v708 = vpop.permute.xlu0 %707
    %709 = vrot.lane.b32.xlu0 %v176, 88
    %v710 = vpop.permute.xlu0 %709
    %v711 = vsel %vm204, %v708, 0
    %v713 = vsel %vm204, %v710, 0
    %715 = vmatprep.subr.mxu0 0.0
    %716 = vmatpush1.xpose.msra.mxu0 0.0
    %717 = vmatprep.subr.mxu0 0.0
    %718 = vmatpush1.xpose.msra.mxu0 0.0
    %719 = vmatprep.subr.mxu0 0.0
    %720 = vmatpush1.xpose.msra.mxu0 0.0
    %721 = vmatprep.subr.mxu0 0.0
    %722 = vmatpush1.xpose.msra.mxu0 0.0
    %723 = vmatprep.subr.mxu0 0.0
    %724 = vmatpush1.xpose.msra.mxu0 0.0
    %725 = vmatprep.subr.mxu0 0.0
    %726 = vmatpush1.xpose.msra.mxu0 0.0
    %727 = vmatprep.subr.mxu0 0.0
    %728 = vmatpush1.xpose.msra.mxu0 0.0
    %729 = vmatprep.subr.mxu0 0.0
    %730 = vmatpush1.xpose.msra.mxu0 0.0
    %731 = vmatprep.subr.mxu0 0.0
    %732 = vmatpush1.xpose.msra.mxu0 0.0
    %733 = vmatprep.subr.mxu0 0.0
    %734 = vmatpush1.xpose.msra.mxu0 0.0
    %735 = vmatprep.subr.mxu0 0.0
    %736 = vmatpush1.xpose.msra.mxu0 0.0
    %737 = vmatprep.subr.mxu0 0.0
    %738 = vmatpush1.xpose.msra.mxu0 0.0
    %739 = vmatprep.subr.mxu0 0.0
    %740 = vmatpush1.xpose.msra.mxu0 0.0
    %741 = vmatprep.subr.mxu0 0.0
    %742 = vmatpush1.xpose.msra.mxu0 0.0
    %743 = vmatprep.subr.mxu0 0.0
    %744 = vmatpush1.xpose.msra.mxu0 0.0
    %745 = vmatprep.subr.mxu0 0.0
    %746 = vmatpush1.xpose.msra.mxu0 %v713
    %747 = vmatprep.subr.mxu0 0.0
    %748 = vmatpush2.xpose.msra.mxu0 0.0
    %749 = vmatprep.subr.mxu0 0.0
    %750 = vmatpush2.xpose.msra.mxu0 0.0
    %751 = vmatprep.subr.mxu0 0.0
    %752 = vmatpush2.xpose.msra.mxu0 0.0
    %753 = vmatprep.subr.mxu0 0.0
    %754 = vmatpush2.xpose.msra.mxu0 0.0
    %755 = vmatprep.subr.mxu0 0.0
    %756 = vmatpush2.xpose.msra.mxu0 0.0
    %757 = vmatprep.subr.mxu0 0.0
    %758 = vmatpush2.xpose.msra.mxu0 0.0
    %759 = vmatprep.subr.mxu0 0.0
    %760 = vmatpush2.xpose.msra.mxu0 0.0
    %761 = vmatprep.subr.mxu0 0.0
    %762 = vmatpush2.xpose.msra.mxu0 0.0
    %763 = vmatprep.subr.mxu0 0.0
    %764 = vmatpush2.xpose.msra.mxu0 0.0
    %765 = vmatprep.subr.mxu0 0.0
    %766 = vmatpush2.xpose.msra.mxu0 0.0
    %767 = vmatprep.subr.mxu0 0.0
    %768 = vmatpush2.xpose.msra.mxu0 0.0
    %769 = vmatprep.subr.mxu0 0.0
    %770 = vmatpush2.xpose.msra.mxu0 0.0
    %771 = vmatprep.subr.mxu0 0.0
    %772 = vmatpush2.xpose.msra.mxu0 0.0
    %773 = vmatprep.subr.mxu0 0.0
    %774 = vmatpush2.xpose.msra.mxu0 0.0
    %775 = vmatprep.subr.mxu0 0.0
    %776 = vmatpush2.xpose.msra.mxu0 0.0
    %777 = vmatprep.subr.mxu0 0.0
    %778 = vmatpush2.xpose.msra.mxu0 0.0
    %779 = vmatprep.mubr.f32.mxu0 0.0
    %780 = vmatmul.mubr.f32.gmra.mxu0 %v711
    %v781 = vpop.f32.mrf.mxu0
    %v782 = vadd.f32 0.0, %v781
    %v783 = vpop.f32.mrf.mxu0
    %784 = vdwg.mxu0
    %v785 = vmul.f32 %v704, 0.35355338
    %v786 = vmul.f32 %v782, 0.35355338
    %v787 = vadd.f32 %v785, %v363
    %v788 = vadd.f32 %v786, %v367
    %v789 = vsel %vm204, %v787, -inf
    %790 = vmax.xlane.f32.xlu0 %v789
    %v791 = vpop.xlane.xlu0 %790
    %v792 = vsel %vm204, %v788, -inf
    %793 = vmax.xlane.f32.xlu0 %v792
    %v794 = vpop.xlane.xlu0 %793
    %v795 = vsub.f32 %v787, %v791
    %v796 = vsub.f32 %v788, %v794
    %v797 = vmul.f32 %v795, 1.442695
    %v798 = vpow.pop %v797
    %v799 = vmul.f32 %v796, 1.442695
    %v800 = vpow.pop %v799
    %v801 = vsel %vm204, %v798, 0.0
    %802 = vadd.xlane.f32.xlu0 %v801
    %v803 = vpop.xlane.xlu0 %802
    %v804 = vsel %vm204, %v800, 0.0
    %805 = vadd.xlane.f32.xlu0 %v804
    %v806 = vpop.xlane.xlu0 %805
    %v807 = vrcp.pop %v803
    %v808 = vrcp.pop %v806
    %v809 = vmul.f32 %v798, %v807
    %v810 = vmul.f32 %v800, %v808
    %811 = vrot.lane.b32.xlu0 %v171, 56
    %v812 = vpop.permute.xlu0 %811
    %v815 = vsel %vm204, %v809, 0
    %817 = vmatprep.subr.mxu0 0.0
    %818 = vmatpush1.msra.mxu0 0.0
    %819 = vmatprep.subr.mxu0 0.0
    %820 = vmatpush1.msra.mxu0 0.0
    %821 = vmatprep.subr.mxu0 0.0
    %822 = vmatpush1.msra.mxu0 0.0
    %823 = vmatprep.subr.mxu0 0.0
    %824 = vmatpush1.msra.mxu0 0.0
    %825 = vmatprep.subr.mxu0 0.0
    %826 = vmatpush1.msra.mxu0 0.0
    %827 = vmatprep.subr.mxu0 0.0
    %828 = vmatpush1.msra.mxu0 0.0
    %829 = vmatprep.subr.mxu0 0.0
    %830 = vmatpush1.msra.mxu0 0.0
    %831 = vmatprep.subr.mxu0 0.0
    %832 = vmatpush1.msra.mxu0 0.0
    %833 = vmatprep.subr.mxu0 0.0
    %834 = vmatpush1.msra.mxu0 0.0
    %835 = vmatprep.subr.mxu0 0.0
    %836 = vmatpush1.msra.mxu0 0.0
    %837 = vmatprep.subr.mxu0 0.0
    %838 = vmatpush1.msra.mxu0 0.0
    %839 = vmatprep.subr.mxu0 0.0
    %840 = vmatpush1.msra.mxu0 0.0
    %841 = vmatprep.subr.mxu0 0.0
    %842 = vmatpush1.msra.mxu0 0.0
    %843 = vmatprep.subr.mxu0 0.0
    %844 = vmatpush1.msra.mxu0 0.0
    %845 = vmatprep.subr.mxu0 0.0
    %846 = vmatpush1.msra.mxu0 0.0
    %847 = vmatprep.subr.mxu0 0.0
    %848 = vmatpush1.msra.mxu0 %v812
    %849 = vmatprep.subr.mxu0 0.0
    %850 = vmatpush2.msra.mxu0 0.0
    %851 = vmatprep.subr.mxu0 0.0
    %852 = vmatpush2.msra.mxu0 0.0
    %853 = vmatprep.subr.mxu0 0.0
    %854 = vmatpush2.msra.mxu0 0.0
    %855 = vmatprep.subr.mxu0 0.0
    %856 = vmatpush2.msra.mxu0 0.0
    %857 = vmatprep.subr.mxu0 0.0
    %858 = vmatpush2.msra.mxu0 0.0
    %859 = vmatprep.subr.mxu0 0.0
    %860 = vmatpush2.msra.mxu0 0.0
    %861 = vmatprep.subr.mxu0 0.0
    %862 = vmatpush2.msra.mxu0 0.0
    %863 = vmatprep.subr.mxu0 0.0
    %864 = vmatpush2.msra.mxu0 0.0
    %865 = vmatprep.subr.mxu0 0.0
    %866 = vmatpush2.msra.mxu0 0.0
    %867 = vmatprep.subr.mxu0 0.0
    %868 = vmatpush2.msra.mxu0 0.0
    %869 = vmatprep.subr.mxu0 0.0
    %870 = vmatpush2.msra.mxu0 0.0
    %871 = vmatprep.subr.mxu0 0.0
    %872 = vmatpush2.msra.mxu0 0.0
    %873 = vmatprep.subr.mxu0 0.0
    %874 = vmatpush2.msra.mxu0 0.0
    %875 = vmatprep.subr.mxu0 0.0
    %876 = vmatpush2.msra.mxu0 0.0
    %877 = vmatprep.subr.mxu0 0.0
    %878 = vmatpush2.msra.mxu0 0.0
    %879 = vmatprep.subr.mxu0 0.0
    %880 = vmatpush2.msra.mxu0 0.0
    %881 = vmatprep.mubr.f32.mxu0 0.0
    %882 = vmatmul.mubr.f32.gmra.mxu0 %v815
    %v883 = vpop.f32.mrf.mxu0
    %v884 = vadd.f32 0.0, %v883
    %v885 = vpop.f32.mrf.mxu0
    %886 = vdwg.mxu0
    %887 = vrot.lane.b32.xlu0 %v176, 56
    %v888 = vpop.permute.xlu0 %887
    %v891 = vsel %vm204, %v810, 0
    %893 = vmatprep.subr.mxu0 0.0
    %894 = vmatpush1.msra.mxu0 0.0
    %895 = vmatprep.subr.mxu0 0.0
    %896 = vmatpush1.msra.mxu0 0.0
    %897 = vmatprep.subr.mxu0 0.0
    %898 = vmatpush1.msra.mxu0 0.0
    %899 = vmatprep.subr.mxu0 0.0
    %900 = vmatpush1.msra.mxu0 0.0
    %901 = vmatprep.subr.mxu0 0.0
    %902 = vmatpush1.msra.mxu0 0.0
    %903 = vmatprep.subr.mxu0 0.0
    %904 = vmatpush1.msra.mxu0 0.0
    %905 = vmatprep.subr.mxu0 0.0
    %906 = vmatpush1.msra.mxu0 0.0
    %907 = vmatprep.subr.mxu0 0.0
    %908 = vmatpush1.msra.mxu0 0.0
    %909 = vmatprep.subr.mxu0 0.0
    %910 = vmatpush1.msra.mxu0 0.0
    %911 = vmatprep.subr.mxu0 0.0
    %912 = vmatpush1.msra.mxu0 0.0
    %913 = vmatprep.subr.mxu0 0.0
    %914 = vmatpush1.msra.mxu0 0.0
    %915 = vmatprep.subr.mxu0 0.0
    %916 = vmatpush1.msra.mxu0 0.0
    %917 = vmatprep.subr.mxu0 0.0
    %918 = vmatpush1.msra.mxu0 0.0
    %919 = vmatprep.subr.mxu0 0.0
    %920 = vmatpush1.msra.mxu0 0.0
    %921 = vmatprep.subr.mxu0 0.0
    %922 = vmatpush1.msra.mxu0 0.0
    %923 = vmatprep.subr.mxu0 0.0
    %924 = vmatpush1.msra.mxu0 %v888
    %925 = vmatprep.subr.mxu0 0.0
    %926 = vmatpush2.msra.mxu0 0.0
    %927 = vmatprep.subr.mxu0 0.0
    %928 = vmatpush2.msra.mxu0 0.0
    %929 = vmatprep.subr.mxu0 0.0
    %930 = vmatpush2.msra.mxu0 0.0
    %931 = vmatprep.subr.mxu0 0.0
    %932 = vmatpush2.msra.mxu0 0.0
    %933 = vmatprep.subr.mxu0 0.0
    %934 = vmatpush2.msra.mxu0 0.0
    %935 = vmatprep.subr.mxu0 0.0
    %936 = vmatpush2.msra.mxu0 0.0
    %937 = vmatprep.subr.mxu0 0.0
    %938 = vmatpush2.msra.mxu0 0.0
    %939 = vmatprep.subr.mxu0 0.0
    %940 = vmatpush2.msra.mxu0 0.0
    %941 = vmatprep.subr.mxu0 0.0
    %942 = vmatpush2.msra.mxu0 0.0
    %943 = vmatprep.subr.mxu0 0.0
    %944 = vmatpush2.msra.mxu0 0.0
    %945 = vmatprep.subr.mxu0 0.0
    %946 = vmatpush2.msra.mxu0 0.0
    %947 = vmatprep.subr.mxu0 0.0
    %948 = vmatpush2.msra.mxu0 0.0
    %949 = vmatprep.subr.mxu0 0.0
    %950 = vmatpush2.msra.mxu0 0.0
    %951 = vmatprep.subr.mxu0 0.0
    %952 = vmatpush2.msra.mxu0 0.0
    %953 = vmatprep.subr.mxu0 0.0
    %954 = vmatpush2.msra.mxu0 0.0
    %955 = vmatprep.subr.mxu0 0.0
    %956 = vmatpush2.msra.mxu0 0.0
    %957 = vmatprep.mubr.f32.mxu0 0.0
    %958 = vmatmul.mubr.f32.gmra.mxu0 %v891
    %v959 = vpop.f32.mrf.mxu0
    %v960 = vadd.f32 0.0, %v959
    %v961 = vpop.f32.mrf.mxu0
    %962 = vdwg.mxu0
    %v964 = vsel %vm204, %v884, 0
    %v967 = vsel %vm204, %v960, 0
    %969 = vmatprep.subr.mxu0 0.0
    %970 = vmatpush1.msra.mxu0 0.0
    %971 = vmatprep.subr.mxu0 0.0
    %972 = vmatpush1.msra.mxu0 0.0
    %973 = vmatprep.subr.mxu0 0.0
    %974 = vmatpush1.msra.mxu0 0.0
    %975 = vmatprep.subr.mxu0 0.0
    %976 = vmatpush1.msra.mxu0 0.0
    %977 = vmatprep.subr.mxu0 0.0
    %978 = vmatpush1.msra.mxu0 0.0
    %979 = vmatprep.subr.mxu0 0.0
    %980 = vmatpush1.msra.mxu0 0.0
    %981 = vmatprep.subr.mxu0 0.0
    %982 = vmatpush1.msra.mxu0 0.0
    %983 = vmatprep.subr.mxu0 0.0
    %984 = vmatpush1.msra.mxu0 0.0
    %985 = vmatprep.subr.mxu0 0.0
    %986 = vmatpush1.msra.mxu0 0.0
    %987 = vmatprep.subr.mxu0 0.0
    %988 = vmatpush1.msra.mxu0 0.0
    %989 = vmatprep.subr.mxu0 0.0
    %990 = vmatpush1.msra.mxu0 0.0
    %991 = vmatprep.subr.mxu0 0.0
    %992 = vmatpush1.msra.mxu0 0.0
    %993 = vmatprep.subr.mxu0 0.0
    %994 = vmatpush1.msra.mxu0 0.0
    %995 = vmatprep.subr.mxu0 0.0
    %996 = vmatpush1.msra.mxu0 0.0
    %997 = vmatprep.subr.mxu0 0.0
    %998 = vmatpush1.msra.mxu0 0.0
    %999 = vmatprep.subr.mxu0 0.0
    %1000 = vmatpush1.msra.mxu0 %v180
    %1001 = vmatprep.subr.mxu0 0.0
    %1002 = vmatpush2.msra.mxu0 0.0
    %1003 = vmatprep.subr.mxu0 0.0
    %1004 = vmatpush2.msra.mxu0 0.0
    %1005 = vmatprep.subr.mxu0 0.0
    %1006 = vmatpush2.msra.mxu0 0.0
    %1007 = vmatprep.subr.mxu0 0.0
    %1008 = vmatpush2.msra.mxu0 0.0
    %1009 = vmatprep.subr.mxu0 0.0
    %1010 = vmatpush2.msra.mxu0 0.0
    %1011 = vmatprep.subr.mxu0 0.0
    %1012 = vmatpush2.msra.mxu0 0.0
    %1013 = vmatprep.subr.mxu0 0.0
    %1014 = vmatpush2.msra.mxu0 0.0
    %1015 = vmatprep.subr.mxu0 0.0
    %1016 = vmatpush2.msra.mxu0 0.0
    %1017 = vmatprep.subr.mxu0 0.0
    %1018 = vmatpush2.msra.mxu0 0.0
    %1019 = vmatprep.subr.mxu0 0.0
    %1020 = vmatpush2.msra.mxu0 0.0
    %1021 = vmatprep.subr.mxu0 0.0
    %1022 = vmatpush2.msra.mxu0 0.0
    %1023 = vmatprep.subr.mxu0 0.0
    %1024 = vmatpush2.msra.mxu0 0.0
    %1025 = vmatprep.subr.mxu0 0.0
    %1026 = vmatpush2.msra.mxu0 0.0
    %1027 = vmatprep.subr.mxu0 0.0
    %1028 = vmatpush2.msra.mxu0 0.0
    %1029 = vmatprep.subr.mxu0 0.0
    %1030 = vmatpush2.msra.mxu0 0.0
    %1031 = vmatprep.subr.mxu0 0.0
    %1032 = vmatpush2.msra.mxu0 0.0
    %1033 = vmatprep.mubr.f32.mxu0 0.0
    %1034 = vmatmul.mubr.f32.gmra.mxu0 %v964
    %v1035 = vpop.f32.mrf.mxu0
    %v1036 = vadd.f32 0.0, %v1035
    %v1037 = vpop.f32.mrf.mxu0
    %1038 = vmatprep.mubr.f32.mxu0 0.0
    %1039 = vmatmul.mubr.f32.gmra.mxu0 %v967
    %v1040 = vpop.f32.mrf.mxu0
    %v1041 = vadd.f32 0.0, %v1040
    %v1042 = vpop.f32.mrf.mxu0
    %1043 = vdwg.mxu0
    %v1044 = vadd.f32 %v627, %v1036
    %v1045 = vadd.f32 %v628, %v1041
    %1046 = vrot.lane.b32.xlu0 %v171, 112
    %v1047 = vpop.permute.xlu0 %1046
    %1048 = vrot.lane.b32.xlu0 %v171, 80
    %v1049 = vpop.permute.xlu0 %1048
    %v1050 = vsel %vm204, %v1047, 0
    %v1052 = vsel %vm204, %v1049, 0
    %1054 = vmatprep.subr.mxu0 0.0
    %1055 = vmatpush1.xpose.msra.mxu0 0.0
    %1056 = vmatprep.subr.mxu0 0.0
    %1057 = vmatpush1.xpose.msra.mxu0 0.0
    %1058 = vmatprep.subr.mxu0 0.0
    %1059 = vmatpush1.xpose.msra.mxu0 0.0
    %1060 = vmatprep.subr.mxu0 0.0
    %1061 = vmatpush1.xpose.msra.mxu0 0.0
    %1062 = vmatprep.subr.mxu0 0.0
    %1063 = vmatpush1.xpose.msra.mxu0 0.0
    %1064 = vmatprep.subr.mxu0 0.0
    %1065 = vmatpush1.xpose.msra.mxu0 0.0
    %1066 = vmatprep.subr.mxu0 0.0
    %1067 = vmatpush1.xpose.msra.mxu0 0.0
    %1068 = vmatprep.subr.mxu0 0.0
    %1069 = vmatpush1.xpose.msra.mxu0 0.0
    %1070 = vmatprep.subr.mxu0 0.0
    %1071 = vmatpush1.xpose.msra.mxu0 0.0
    %1072 = vmatprep.subr.mxu0 0.0
    %1073 = vmatpush1.xpose.msra.mxu0 0.0
    %1074 = vmatprep.subr.mxu0 0.0
    %1075 = vmatpush1.xpose.msra.mxu0 0.0
    %1076 = vmatprep.subr.mxu0 0.0
    %1077 = vmatpush1.xpose.msra.mxu0 0.0
    %1078 = vmatprep.subr.mxu0 0.0
    %1079 = vmatpush1.xpose.msra.mxu0 0.0
    %1080 = vmatprep.subr.mxu0 0.0
    %1081 = vmatpush1.xpose.msra.mxu0 0.0
    %1082 = vmatprep.subr.mxu0 0.0
    %1083 = vmatpush1.xpose.msra.mxu0 0.0
    %1084 = vmatprep.subr.mxu0 0.0
    %1085 = vmatpush1.xpose.msra.mxu0 %v1052
    %1086 = vmatprep.subr.mxu0 0.0
    %1087 = vmatpush2.xpose.msra.mxu0 0.0
    %1088 = vmatprep.subr.mxu0 0.0
    %1089 = vmatpush2.xpose.msra.mxu0 0.0
    %1090 = vmatprep.subr.mxu0 0.0
    %1091 = vmatpush2.xpose.msra.mxu0 0.0
    %1092 = vmatprep.subr.mxu0 0.0
    %1093 = vmatpush2.xpose.msra.mxu0 0.0
    %1094 = vmatprep.subr.mxu0 0.0
    %1095 = vmatpush2.xpose.msra.mxu0 0.0
    %1096 = vmatprep.subr.mxu0 0.0
    %1097 = vmatpush2.xpose.msra.mxu0 0.0
    %1098 = vmatprep.subr.mxu0 0.0
    %1099 = vmatpush2.xpose.msra.mxu0 0.0
    %1100 = vmatprep.subr.mxu0 0.0
    %1101 = vmatpush2.xpose.msra.mxu0 0.0
    %1102 = vmatprep.subr.mxu0 0.0
    %1103 = vmatpush2.xpose.msra.mxu0 0.0
    %1104 = vmatprep.subr.mxu0 0.0
    %1105 = vmatpush2.xpose.msra.mxu0 0.0
    %1106 = vmatprep.subr.mxu0 0.0
    %1107 = vmatpush2.xpose.msra.mxu0 0.0
    %1108 = vmatprep.subr.mxu0 0.0
    %1109 = vmatpush2.xpose.msra.mxu0 0.0
    %1110 = vmatprep.subr.mxu0 0.0
    %1111 = vmatpush2.xpose.msra.mxu0 0.0
    %1112 = vmatprep.subr.mxu0 0.0
    %1113 = vmatpush2.xpose.msra.mxu0 0.0
    %1114 = vmatprep.subr.mxu0 0.0
    %1115 = vmatpush2.xpose.msra.mxu0 0.0
    %1116 = vmatprep.subr.mxu0 0.0
    %1117 = vmatpush2.xpose.msra.mxu0 0.0
    %1118 = vmatprep.mubr.f32.mxu0 0.0
    %1119 = vmatmul.mubr.f32.gmra.mxu0 %v1050
    %v1120 = vpop.f32.mrf.mxu0
    %v1121 = vadd.f32 0.0, %v1120
    %v1122 = vpop.f32.mrf.mxu0
    %1123 = vdwg.mxu0
    %1124 = vrot.lane.b32.xlu0 %v176, 112
    %v1125 = vpop.permute.xlu0 %1124
    %1126 = vrot.lane.b32.xlu0 %v176, 80
    %v1127 = vpop.permute.xlu0 %1126
    %v1128 = vsel %vm204, %v1125, 0
    %v1130 = vsel %vm204, %v1127, 0
    %1132 = vmatprep.subr.mxu0 0.0
    %1133 = vmatpush1.xpose.msra.mxu0 0.0
    %1134 = vmatprep.subr.mxu0 0.0
    %1135 = vmatpush1.xpose.msra.mxu0 0.0
    %1136 = vmatprep.subr.mxu0 0.0
    %1137 = vmatpush1.xpose.msra.mxu0 0.0
    %1138 = vmatprep.subr.mxu0 0.0
    %1139 = vmatpush1.xpose.msra.mxu0 0.0
    %1140 = vmatprep.subr.mxu0 0.0
    %1141 = vmatpush1.xpose.msra.mxu0 0.0
    %1142 = vmatprep.subr.mxu0 0.0
    %1143 = vmatpush1.xpose.msra.mxu0 0.0
    %1144 = vmatprep.subr.mxu0 0.0
    %1145 = vmatpush1.xpose.msra.mxu0 0.0
    %1146 = vmatprep.subr.mxu0 0.0
    %1147 = vmatpush1.xpose.msra.mxu0 0.0
    %1148 = vmatprep.subr.mxu0 0.0
    %1149 = vmatpush1.xpose.msra.mxu0 0.0
    %1150 = vmatprep.subr.mxu0 0.0
    %1151 = vmatpush1.xpose.msra.mxu0 0.0
    %1152 = vmatprep.subr.mxu0 0.0
    %1153 = vmatpush1.xpose.msra.mxu0 0.0
    %1154 = vmatprep.subr.mxu0 0.0
    %1155 = vmatpush1.xpose.msra.mxu0 0.0
    %1156 = vmatprep.subr.mxu0 0.0
    %1157 = vmatpush1.xpose.msra.mxu0 0.0
    %1158 = vmatprep.subr.mxu0 0.0
    %1159 = vmatpush1.xpose.msra.mxu0 0.0
    %1160 = vmatprep.subr.mxu0 0.0
    %1161 = vmatpush1.xpose.msra.mxu0 0.0
    %1162 = vmatprep.subr.mxu0 0.0
    %1163 = vmatpush1.xpose.msra.mxu0 %v1130
    %1164 = vmatprep.subr.mxu0 0.0
    %1165 = vmatpush2.xpose.msra.mxu0 0.0
    %1166 = vmatprep.subr.mxu0 0.0
    %1167 = vmatpush2.xpose.msra.mxu0 0.0
    %1168 = vmatprep.subr.mxu0 0.0
    %1169 = vmatpush2.xpose.msra.mxu0 0.0
    %1170 = vmatprep.subr.mxu0 0.0
    %1171 = vmatpush2.xpose.msra.mxu0 0.0
    %1172 = vmatprep.subr.mxu0 0.0
    %1173 = vmatpush2.xpose.msra.mxu0 0.0
    %1174 = vmatprep.subr.mxu0 0.0
    %1175 = vmatpush2.xpose.msra.mxu0 0.0
    %1176 = vmatprep.subr.mxu0 0.0
    %1177 = vmatpush2.xpose.msra.mxu0 0.0
    %1178 = vmatprep.subr.mxu0 0.0
    %1179 = vmatpush2.xpose.msra.mxu0 0.0
    %1180 = vmatprep.subr.mxu0 0.0
    %1181 = vmatpush2.xpose.msra.mxu0 0.0
    %1182 = vmatprep.subr.mxu0 0.0
    %1183 = vmatpush2.xpose.msra.mxu0 0.0
    %1184 = vmatprep.subr.mxu0 0.0
    %1185 = vmatpush2.xpose.msra.mxu0 0.0
    %1186 = vmatprep.subr.mxu0 0.0
    %1187 = vmatpush2.xpose.msra.mxu0 0.0
    %1188 = vmatprep.subr.mxu0 0.0
    %1189 = vmatpush2.xpose.msra.mxu0 0.0
    %1190 = vmatprep.subr.mxu0 0.0
    %1191 = vmatpush2.xpose.msra.mxu0 0.0
    %1192 = vmatprep.subr.mxu0 0.0
    %1193 = vmatpush2.xpose.msra.mxu0 0.0
    %1194 = vmatprep.subr.mxu0 0.0
    %1195 = vmatpush2.xpose.msra.mxu0 0.0
    %1196 = vmatprep.mubr.f32.mxu0 0.0
    %1197 = vmatmul.mubr.f32.gmra.mxu0 %v1128
    %v1198 = vpop.f32.mrf.mxu0
    %v1199 = vadd.f32 0.0, %v1198
    %v1200 = vpop.f32.mrf.mxu0
    %1201 = vdwg.mxu0
    %v1202 = vmul.f32 %v1121, 0.35355338
    %v1203 = vmul.f32 %v1199, 0.35355338
    %v1204 = vadd.f32 %v1202, %v363
    %v1205 = vadd.f32 %v1203, %v367
    %v1206 = vsel %vm204, %v1204, -inf
    %1207 = vmax.xlane.f32.xlu0 %v1206
    %v1208 = vpop.xlane.xlu0 %1207
    %v1209 = vsel %vm204, %v1205, -inf
    %1210 = vmax.xlane.f32.xlu0 %v1209
    %v1211 = vpop.xlane.xlu0 %1210
    %v1212 = vsub.f32 %v1204, %v1208
    %v1213 = vsub.f32 %v1205, %v1211
    %v1214 = vmul.f32 %v1212, 1.442695
    %v1215 = vpow.pop %v1214
    %v1216 = vmul.f32 %v1213, 1.442695
    %v1217 = vpow.pop %v1216
    %v1218 = vsel %vm204, %v1215, 0.0
    %1219 = vadd.xlane.f32.xlu0 %v1218
    %v1220 = vpop.xlane.xlu0 %1219
    %v1221 = vsel %vm204, %v1217, 0.0
    %1222 = vadd.xlane.f32.xlu0 %v1221
    %v1223 = vpop.xlane.xlu0 %1222
    %v1224 = vrcp.pop %v1220
    %v1225 = vrcp.pop %v1223
    %v1226 = vmul.f32 %v1215, %v1224
    %v1227 = vmul.f32 %v1217, %v1225
    %1228 = vrot.lane.b32.xlu0 %v171, 48
    %v1229 = vpop.permute.xlu0 %1228
    %v1232 = vsel %vm204, %v1226, 0
    %1234 = vmatprep.subr.mxu0 0.0
    %1235 = vmatpush1.msra.mxu0 0.0
    %1236 = vmatprep.subr.mxu0 0.0
    %1237 = vmatpush1.msra.mxu0 0.0
    %1238 = vmatprep.subr.mxu0 0.0
    %1239 = vmatpush1.msra.mxu0 0.0
    %1240 = vmatprep.subr.mxu0 0.0
    %1241 = vmatpush1.msra.mxu0 0.0
    %1242 = vmatprep.subr.mxu0 0.0
    %1243 = vmatpush1.msra.mxu0 0.0
    %1244 = vmatprep.subr.mxu0 0.0
    %1245 = vmatpush1.msra.mxu0 0.0
    %1246 = vmatprep.subr.mxu0 0.0
    %1247 = vmatpush1.msra.mxu0 0.0
    %1248 = vmatprep.subr.mxu0 0.0
    %1249 = vmatpush1.msra.mxu0 0.0
    %1250 = vmatprep.subr.mxu0 0.0
    %1251 = vmatpush1.msra.mxu0 0.0
    %1252 = vmatprep.subr.mxu0 0.0
    %1253 = vmatpush1.msra.mxu0 0.0
    %1254 = vmatprep.subr.mxu0 0.0
    %1255 = vmatpush1.msra.mxu0 0.0
    %1256 = vmatprep.subr.mxu0 0.0
    %1257 = vmatpush1.msra.mxu0 0.0
    %1258 = vmatprep.subr.mxu0 0.0
    %1259 = vmatpush1.msra.mxu0 0.0
    %1260 = vmatprep.subr.mxu0 0.0
    %1261 = vmatpush1.msra.mxu0 0.0
    %1262 = vmatprep.subr.mxu0 0.0
    %1263 = vmatpush1.msra.mxu0 0.0
    %1264 = vmatprep.subr.mxu0 0.0
    %1265 = vmatpush1.msra.mxu0 %v1229
    %1266 = vmatprep.subr.mxu0 0.0
    %1267 = vmatpush2.msra.mxu0 0.0
    %1268 = vmatprep.subr.mxu0 0.0
    %1269 = vmatpush2.msra.mxu0 0.0
    %1270 = vmatprep.subr.mxu0 0.0
    %1271 = vmatpush2.msra.mxu0 0.0
    %1272 = vmatprep.subr.mxu0 0.0
    %1273 = vmatpush2.msra.mxu0 0.0
    %1274 = vmatprep.subr.mxu0 0.0
    %1275 = vmatpush2.msra.mxu0 0.0
    %1276 = vmatprep.subr.mxu0 0.0
    %1277 = vmatpush2.msra.mxu0 0.0
    %1278 = vmatprep.subr.mxu0 0.0
    %1279 = vmatpush2.msra.mxu0 0.0
    %1280 = vmatprep.subr.mxu0 0.0
    %1281 = vmatpush2.msra.mxu0 0.0
    %1282 = vmatprep.subr.mxu0 0.0
    %1283 = vmatpush2.msra.mxu0 0.0
    %1284 = vmatprep.subr.mxu0 0.0
    %1285 = vmatpush2.msra.mxu0 0.0
    %1286 = vmatprep.subr.mxu0 0.0
    %1287 = vmatpush2.msra.mxu0 0.0
    %1288 = vmatprep.subr.mxu0 0.0
    %1289 = vmatpush2.msra.mxu0 0.0
    %1290 = vmatprep.subr.mxu0 0.0
    %1291 = vmatpush2.msra.mxu0 0.0
    %1292 = vmatprep.subr.mxu0 0.0
    %1293 = vmatpush2.msra.mxu0 0.0
    %1294 = vmatprep.subr.mxu0 0.0
    %1295 = vmatpush2.msra.mxu0 0.0
    %1296 = vmatprep.subr.mxu0 0.0
    %1297 = vmatpush2.msra.mxu0 0.0
    %1298 = vmatprep.mubr.f32.mxu0 0.0
    %1299 = vmatmul.mubr.f32.gmra.mxu0 %v1232
    %v1300 = vpop.f32.mrf.mxu0
    %v1301 = vadd.f32 0.0, %v1300
    %v1302 = vpop.f32.mrf.mxu0
    %1303 = vdwg.mxu0
    %1304 = vrot.lane.b32.xlu0 %v176, 48
    %v1305 = vpop.permute.xlu0 %1304
    %v1308 = vsel %vm204, %v1227, 0
    %1310 = vmatprep.subr.mxu0 0.0
    %1311 = vmatpush1.msra.mxu0 0.0
    %1312 = vmatprep.subr.mxu0 0.0
    %1313 = vmatpush1.msra.mxu0 0.0
    %1314 = vmatprep.subr.mxu0 0.0
    %1315 = vmatpush1.msra.mxu0 0.0
    %1316 = vmatprep.subr.mxu0 0.0
    %1317 = vmatpush1.msra.mxu0 0.0
    %1318 = vmatprep.subr.mxu0 0.0
    %1319 = vmatpush1.msra.mxu0 0.0
    %1320 = vmatprep.subr.mxu0 0.0
    %1321 = vmatpush1.msra.mxu0 0.0
    %1322 = vmatprep.subr.mxu0 0.0
    %1323 = vmatpush1.msra.mxu0 0.0
    %1324 = vmatprep.subr.mxu0 0.0
    %1325 = vmatpush1.msra.mxu0 0.0
    %1326 = vmatprep.subr.mxu0 0.0
    %1327 = vmatpush1.msra.mxu0 0.0
    %1328 = vmatprep.subr.mxu0 0.0
    %1329 = vmatpush1.msra.mxu0 0.0
    %1330 = vmatprep.subr.mxu0 0.0
    %1331 = vmatpush1.msra.mxu0 0.0
    %1332 = vmatprep.subr.mxu0 0.0
    %1333 = vmatpush1.msra.mxu0 0.0
    %1334 = vmatprep.subr.mxu0 0.0
    %1335 = vmatpush1.msra.mxu0 0.0
    %1336 = vmatprep.subr.mxu0 0.0
    %1337 = vmatpush1.msra.mxu0 0.0
    %1338 = vmatprep.subr.mxu0 0.0
    %1339 = vmatpush1.msra.mxu0 0.0
    %1340 = vmatprep.subr.mxu0 0.0
    %1341 = vmatpush1.msra.mxu0 %v1305
    %1342 = vmatprep.subr.mxu0 0.0
    %1343 = vmatpush2.msra.mxu0 0.0
    %1344 = vmatprep.subr.mxu0 0.0
    %1345 = vmatpush2.msra.mxu0 0.0
    %1346 = vmatprep.subr.mxu0 0.0
    %1347 = vmatpush2.msra.mxu0 0.0
    %1348 = vmatprep.subr.mxu0 0.0
    %1349 = vmatpush2.msra.mxu0 0.0
    %1350 = vmatprep.subr.mxu0 0.0
    %1351 = vmatpush2.msra.mxu0 0.0
    %1352 = vmatprep.subr.mxu0 0.0
    %1353 = vmatpush2.msra.mxu0 0.0
    %1354 = vmatprep.subr.mxu0 0.0
    %1355 = vmatpush2.msra.mxu0 0.0
    %1356 = vmatprep.subr.mxu0 0.0
    %1357 = vmatpush2.msra.mxu0 0.0
    %1358 = vmatprep.subr.mxu0 0.0
    %1359 = vmatpush2.msra.mxu0 0.0
    %1360 = vmatprep.subr.mxu0 0.0
    %1361 = vmatpush2.msra.mxu0 0.0
    %1362 = vmatprep.subr.mxu0 0.0
    %1363 = vmatpush2.msra.mxu0 0.0
    %1364 = vmatprep.subr.mxu0 0.0
    %1365 = vmatpush2.msra.mxu0 0.0
    %1366 = vmatprep.subr.mxu0 0.0
    %1367 = vmatpush2.msra.mxu0 0.0
    %1368 = vmatprep.subr.mxu0 0.0
    %1369 = vmatpush2.msra.mxu0 0.0
    %1370 = vmatprep.subr.mxu0 0.0
    %1371 = vmatpush2.msra.mxu0 0.0
    %1372 = vmatprep.subr.mxu0 0.0
    %1373 = vmatpush2.msra.mxu0 0.0
    %1374 = vmatprep.mubr.f32.mxu0 0.0
    %1375 = vmatmul.mubr.f32.gmra.mxu0 %v1308
    %v1376 = vpop.f32.mrf.mxu0
    %v1377 = vadd.f32 0.0, %v1376
    %v1378 = vpop.f32.mrf.mxu0
    %1379 = vdwg.mxu0
    %v1381 = vsel %vm204, %v1301, 0
    %v1384 = vsel %vm204, %v1377, 0
    %1386 = vmatprep.subr.mxu0 0.0
    %1387 = vmatpush1.msra.mxu0 0.0
    %1388 = vmatprep.subr.mxu0 0.0
    %1389 = vmatpush1.msra.mxu0 0.0
    %1390 = vmatprep.subr.mxu0 0.0
    %1391 = vmatpush1.msra.mxu0 0.0
    %1392 = vmatprep.subr.mxu0 0.0
    %1393 = vmatpush1.msra.mxu0 0.0
    %1394 = vmatprep.subr.mxu0 0.0
    %1395 = vmatpush1.msra.mxu0 0.0
    %1396 = vmatprep.subr.mxu0 0.0
    %1397 = vmatpush1.msra.mxu0 0.0
    %1398 = vmatprep.subr.mxu0 0.0
    %1399 = vmatpush1.msra.mxu0 0.0
    %1400 = vmatprep.subr.mxu0 0.0
    %1401 = vmatpush1.msra.mxu0 0.0
    %1402 = vmatprep.subr.mxu0 0.0
    %1403 = vmatpush1.msra.mxu0 0.0
    %1404 = vmatprep.subr.mxu0 0.0
    %1405 = vmatpush1.msra.mxu0 0.0
    %1406 = vmatprep.subr.mxu0 0.0
    %1407 = vmatpush1.msra.mxu0 0.0
    %1408 = vmatprep.subr.mxu0 0.0
    %1409 = vmatpush1.msra.mxu0 0.0
    %1410 = vmatprep.subr.mxu0 0.0
    %1411 = vmatpush1.msra.mxu0 0.0
    %1412 = vmatprep.subr.mxu0 0.0
    %1413 = vmatpush1.msra.mxu0 0.0
    %1414 = vmatprep.subr.mxu0 0.0
    %1415 = vmatpush1.msra.mxu0 0.0
    %1416 = vmatprep.subr.mxu0 0.0
    %1417 = vmatpush1.msra.mxu0 %v181
    %1418 = vmatprep.subr.mxu0 0.0
    %1419 = vmatpush2.msra.mxu0 0.0
    %1420 = vmatprep.subr.mxu0 0.0
    %1421 = vmatpush2.msra.mxu0 0.0
    %1422 = vmatprep.subr.mxu0 0.0
    %1423 = vmatpush2.msra.mxu0 0.0
    %1424 = vmatprep.subr.mxu0 0.0
    %1425 = vmatpush2.msra.mxu0 0.0
    %1426 = vmatprep.subr.mxu0 0.0
    %1427 = vmatpush2.msra.mxu0 0.0
    %1428 = vmatprep.subr.mxu0 0.0
    %1429 = vmatpush2.msra.mxu0 0.0
    %1430 = vmatprep.subr.mxu0 0.0
    %1431 = vmatpush2.msra.mxu0 0.0
    %1432 = vmatprep.subr.mxu0 0.0
    %1433 = vmatpush2.msra.mxu0 0.0
    %1434 = vmatprep.subr.mxu0 0.0
    %1435 = vmatpush2.msra.mxu0 0.0
    %1436 = vmatprep.subr.mxu0 0.0
    %1437 = vmatpush2.msra.mxu0 0.0
    %1438 = vmatprep.subr.mxu0 0.0
    %1439 = vmatpush2.msra.mxu0 0.0
    %1440 = vmatprep.subr.mxu0 0.0
    %1441 = vmatpush2.msra.mxu0 0.0
    %1442 = vmatprep.subr.mxu0 0.0
    %1443 = vmatpush2.msra.mxu0 0.0
    %1444 = vmatprep.subr.mxu0 0.0
    %1445 = vmatpush2.msra.mxu0 0.0
    %1446 = vmatprep.subr.mxu0 0.0
    %1447 = vmatpush2.msra.mxu0 0.0
    %1448 = vmatprep.subr.mxu0 0.0
    %1449 = vmatpush2.msra.mxu0 0.0
    %1450 = vmatprep.mubr.f32.mxu0 0.0
    %1451 = vmatmul.mubr.f32.gmra.mxu0 %v1381
    %v1452 = vpop.f32.mrf.mxu0
    %v1453 = vadd.f32 0.0, %v1452
    %v1454 = vpop.f32.mrf.mxu0
    %1455 = vmatprep.mubr.f32.mxu0 0.0
    %1456 = vmatmul.mubr.f32.gmra.mxu0 %v1384
    %v1457 = vpop.f32.mrf.mxu0
    %v1458 = vadd.f32 0.0, %v1457
    %v1459 = vpop.f32.mrf.mxu0
    %1460 = vdwg.mxu0
    %v1461 = vadd.f32 %v1044, %v1453
    %v1462 = vadd.f32 %v1045, %v1458
    %1463 = vrot.lane.b32.xlu0 %v171, 104
    %v1464 = vpop.permute.xlu0 %1463
    %1465 = vrot.lane.b32.xlu0 %v171, 72
    %v1466 = vpop.permute.xlu0 %1465
    %v1467 = vsel %vm204, %v1464, 0
    %v1469 = vsel %vm204, %v1466, 0
    %1471 = vmatprep.subr.mxu0 0.0
    %1472 = vmatpush1.xpose.msra.mxu0 0.0
    %1473 = vmatprep.subr.mxu0 0.0
    %1474 = vmatpush1.xpose.msra.mxu0 0.0
    %1475 = vmatprep.subr.mxu0 0.0
    %1476 = vmatpush1.xpose.msra.mxu0 0.0
    %1477 = vmatprep.subr.mxu0 0.0
    %1478 = vmatpush1.xpose.msra.mxu0 0.0
    %1479 = vmatprep.subr.mxu0 0.0
    %1480 = vmatpush1.xpose.msra.mxu0 0.0
    %1481 = vmatprep.subr.mxu0 0.0
    %1482 = vmatpush1.xpose.msra.mxu0 0.0
    %1483 = vmatprep.subr.mxu0 0.0
    %1484 = vmatpush1.xpose.msra.mxu0 0.0
    %1485 = vmatprep.subr.mxu0 0.0
    %1486 = vmatpush1.xpose.msra.mxu0 0.0
    %1487 = vmatprep.subr.mxu0 0.0
    %1488 = vmatpush1.xpose.msra.mxu0 0.0
    %1489 = vmatprep.subr.mxu0 0.0
    %1490 = vmatpush1.xpose.msra.mxu0 0.0
    %1491 = vmatprep.subr.mxu0 0.0
    %1492 = vmatpush1.xpose.msra.mxu0 0.0
    %1493 = vmatprep.subr.mxu0 0.0
    %1494 = vmatpush1.xpose.msra.mxu0 0.0
    %1495 = vmatprep.subr.mxu0 0.0
    %1496 = vmatpush1.xpose.msra.mxu0 0.0
    %1497 = vmatprep.subr.mxu0 0.0
    %1498 = vmatpush1.xpose.msra.mxu0 0.0
    %1499 = vmatprep.subr.mxu0 0.0
    %1500 = vmatpush1.xpose.msra.mxu0 0.0
    %1501 = vmatprep.subr.mxu0 0.0
    %1502 = vmatpush1.xpose.msra.mxu0 %v1469
    %1503 = vmatprep.subr.mxu0 0.0
    %1504 = vmatpush2.xpose.msra.mxu0 0.0
    %1505 = vmatprep.subr.mxu0 0.0
    %1506 = vmatpush2.xpose.msra.mxu0 0.0
    %1507 = vmatprep.subr.mxu0 0.0
    %1508 = vmatpush2.xpose.msra.mxu0 0.0
    %1509 = vmatprep.subr.mxu0 0.0
    %1510 = vmatpush2.xpose.msra.mxu0 0.0
    %1511 = vmatprep.subr.mxu0 0.0
    %1512 = vmatpush2.xpose.msra.mxu0 0.0
    %1513 = vmatprep.subr.mxu0 0.0
    %1514 = vmatpush2.xpose.msra.mxu0 0.0
    %1515 = vmatprep.subr.mxu0 0.0
    %1516 = vmatpush2.xpose.msra.mxu0 0.0
    %1517 = vmatprep.subr.mxu0 0.0
    %1518 = vmatpush2.xpose.msra.mxu0 0.0
    %1519 = vmatprep.subr.mxu0 0.0
    %1520 = vmatpush2.xpose.msra.mxu0 0.0
    %1521 = vmatprep.subr.mxu0 0.0
    %1522 = vmatpush2.xpose.msra.mxu0 0.0
    %1523 = vmatprep.subr.mxu0 0.0
    %1524 = vmatpush2.xpose.msra.mxu0 0.0
    %1525 = vmatprep.subr.mxu0 0.0
    %1526 = vmatpush2.xpose.msra.mxu0 0.0
    %1527 = vmatprep.subr.mxu0 0.0
    %1528 = vmatpush2.xpose.msra.mxu0 0.0
    %1529 = vmatprep.subr.mxu0 0.0
    %1530 = vmatpush2.xpose.msra.mxu0 0.0
    %1531 = vmatprep.subr.mxu0 0.0
    %1532 = vmatpush2.xpose.msra.mxu0 0.0
    %1533 = vmatprep.subr.mxu0 0.0
    %1534 = vmatpush2.xpose.msra.mxu0 0.0
    %1535 = vmatprep.mubr.f32.mxu0 0.0
    %1536 = vmatmul.mubr.f32.gmra.mxu0 %v1467
    %v1537 = vpop.f32.mrf.mxu0
    %v1538 = vadd.f32 0.0, %v1537
    %v1539 = vpop.f32.mrf.mxu0
    %1540 = vdwg.mxu0
    %1541 = vrot.lane.b32.xlu0 %v176, 104
    %v1542 = vpop.permute.xlu0 %1541
    %1543 = vrot.lane.b32.xlu0 %v176, 72
    %v1544 = vpop.permute.xlu0 %1543
    %v1545 = vsel %vm204, %v1542, 0
    %v1547 = vsel %vm204, %v1544, 0
    %1549 = vmatprep.subr.mxu0 0.0
    %1550 = vmatpush1.xpose.msra.mxu0 0.0
    %1551 = vmatprep.subr.mxu0 0.0
    %1552 = vmatpush1.xpose.msra.mxu0 0.0
    %1553 = vmatprep.subr.mxu0 0.0
    %1554 = vmatpush1.xpose.msra.mxu0 0.0
    %1555 = vmatprep.subr.mxu0 0.0
    %1556 = vmatpush1.xpose.msra.mxu0 0.0
    %1557 = vmatprep.subr.mxu0 0.0
    %1558 = vmatpush1.xpose.msra.mxu0 0.0
    %1559 = vmatprep.subr.mxu0 0.0
    %1560 = vmatpush1.xpose.msra.mxu0 0.0
    %1561 = vmatprep.subr.mxu0 0.0
    %1562 = vmatpush1.xpose.msra.mxu0 0.0
    %1563 = vmatprep.subr.mxu0 0.0
    %1564 = vmatpush1.xpose.msra.mxu0 0.0
    %1565 = vmatprep.subr.mxu0 0.0
    %1566 = vmatpush1.xpose.msra.mxu0 0.0
    %1567 = vmatprep.subr.mxu0 0.0
    %1568 = vmatpush1.xpose.msra.mxu0 0.0
    %1569 = vmatprep.subr.mxu0 0.0
    %1570 = vmatpush1.xpose.msra.mxu0 0.0
    %1571 = vmatprep.subr.mxu0 0.0
    %1572 = vmatpush1.xpose.msra.mxu0 0.0
    %1573 = vmatprep.subr.mxu0 0.0
    %1574 = vmatpush1.xpose.msra.mxu0 0.0
    %1575 = vmatprep.subr.mxu0 0.0
    %1576 = vmatpush1.xpose.msra.mxu0 0.0
    %1577 = vmatprep.subr.mxu0 0.0
    %1578 = vmatpush1.xpose.msra.mxu0 0.0
    %1579 = vmatprep.subr.mxu0 0.0
    %1580 = vmatpush1.xpose.msra.mxu0 %v1547
    %1581 = vmatprep.subr.mxu0 0.0
    %1582 = vmatpush2.xpose.msra.mxu0 0.0
    %1583 = vmatprep.subr.mxu0 0.0
    %1584 = vmatpush2.xpose.msra.mxu0 0.0
    %1585 = vmatprep.subr.mxu0 0.0
    %1586 = vmatpush2.xpose.msra.mxu0 0.0
    %1587 = vmatprep.subr.mxu0 0.0
    %1588 = vmatpush2.xpose.msra.mxu0 0.0
    %1589 = vmatprep.subr.mxu0 0.0
    %1590 = vmatpush2.xpose.msra.mxu0 0.0
    %1591 = vmatprep.subr.mxu0 0.0
    %1592 = vmatpush2.xpose.msra.mxu0 0.0
    %1593 = vmatprep.subr.mxu0 0.0
    %1594 = vmatpush2.xpose.msra.mxu0 0.0
    %1595 = vmatprep.subr.mxu0 0.0
    %1596 = vmatpush2.xpose.msra.mxu0 0.0
    %1597 = vmatprep.subr.mxu0 0.0
    %1598 = vmatpush2.xpose.msra.mxu0 0.0
    %1599 = vmatprep.subr.mxu0 0.0
    %1600 = vmatpush2.xpose.msra.mxu0 0.0
    %1601 = vmatprep.subr.mxu0 0.0
    %1602 = vmatpush2.xpose.msra.mxu0 0.0
    %1603 = vmatprep.subr.mxu0 0.0
    %1604 = vmatpush2.xpose.msra.mxu0 0.0
    %1605 = vmatprep.subr.mxu0 0.0
    %1606 = vmatpush2.xpose.msra.mxu0 0.0
    %1607 = vmatprep.subr.mxu0 0.0
    %1608 = vmatpush2.xpose.msra.mxu0 0.0
    %1609 = vmatprep.subr.mxu0 0.0
    %1610 = vmatpush2.xpose.msra.mxu0 0.0
    %1611 = vmatprep.subr.mxu0 0.0
    %1612 = vmatpush2.xpose.msra.mxu0 0.0
    %1613 = vmatprep.mubr.f32.mxu0 0.0
    %1614 = vmatmul.mubr.f32.gmra.mxu0 %v1545
    %v1615 = vpop.f32.mrf.mxu0
    %v1616 = vadd.f32 0.0, %v1615
    %v1617 = vpop.f32.mrf.mxu0
    %1618 = vdwg.mxu0
    %v1619 = vmul.f32 %v1538, 0.35355338
    %v1620 = vmul.f32 %v1616, 0.35355338
    %v1621 = vadd.f32 %v1619, %v363
    %v1622 = vadd.f32 %v1620, %v367
    %v1623 = vsel %vm204, %v1621, -inf
    %1624 = vmax.xlane.f32.xlu0 %v1623
    %v1625 = vpop.xlane.xlu0 %1624
    %v1626 = vsel %vm204, %v1622, -inf
    %1627 = vmax.xlane.f32.xlu0 %v1626
    %v1628 = vpop.xlane.xlu0 %1627
    %v1629 = vsub.f32 %v1621, %v1625
    %v1630 = vsub.f32 %v1622, %v1628
    %v1631 = vmul.f32 %v1629, 1.442695
    %v1632 = vpow.pop %v1631
    %v1633 = vmul.f32 %v1630, 1.442695
    %v1634 = vpow.pop %v1633
    %v1635 = vsel %vm204, %v1632, 0.0
    %1636 = vadd.xlane.f32.xlu0 %v1635
    %v1637 = vpop.xlane.xlu0 %1636
    %v1638 = vsel %vm204, %v1634, 0.0
    %1639 = vadd.xlane.f32.xlu0 %v1638
    %v1640 = vpop.xlane.xlu0 %1639
    %v1641 = vrcp.pop %v1637
    %v1642 = vrcp.pop %v1640
    %v1643 = vmul.f32 %v1632, %v1641
    %v1644 = vmul.f32 %v1634, %v1642
    %1645 = vrot.lane.b32.xlu0 %v171, 40
    %v1646 = vpop.permute.xlu0 %1645
    %v1649 = vsel %vm204, %v1643, 0
    %1651 = vmatprep.subr.mxu0 0.0
    %1652 = vmatpush1.msra.mxu0 0.0
    %1653 = vmatprep.subr.mxu0 0.0
    %1654 = vmatpush1.msra.mxu0 0.0
    %1655 = vmatprep.subr.mxu0 0.0
    %1656 = vmatpush1.msra.mxu0 0.0
    %1657 = vmatprep.subr.mxu0 0.0
    %1658 = vmatpush1.msra.mxu0 0.0
    %1659 = vmatprep.subr.mxu0 0.0
    %1660 = vmatpush1.msra.mxu0 0.0
    %1661 = vmatprep.subr.mxu0 0.0
    %1662 = vmatpush1.msra.mxu0 0.0
    %1663 = vmatprep.subr.mxu0 0.0
    %1664 = vmatpush1.msra.mxu0 0.0
    %1665 = vmatprep.subr.mxu0 0.0
    %1666 = vmatpush1.msra.mxu0 0.0
    %1667 = vmatprep.subr.mxu0 0.0
    %1668 = vmatpush1.msra.mxu0 0.0
    %1669 = vmatprep.subr.mxu0 0.0
    %1670 = vmatpush1.msra.mxu0 0.0
    %1671 = vmatprep.subr.mxu0 0.0
    %1672 = vmatpush1.msra.mxu0 0.0
    %1673 = vmatprep.subr.mxu0 0.0
    %1674 = vmatpush1.msra.mxu0 0.0
    %1675 = vmatprep.subr.mxu0 0.0
    %1676 = vmatpush1.msra.mxu0 0.0
    %1677 = vmatprep.subr.mxu0 0.0
    %1678 = vmatpush1.msra.mxu0 0.0
    %1679 = vmatprep.subr.mxu0 0.0
    %1680 = vmatpush1.msra.mxu0 0.0
    %1681 = vmatprep.subr.mxu0 0.0
    %1682 = vmatpush1.msra.mxu0 %v1646
    %1683 = vmatprep.subr.mxu0 0.0
    %1684 = vmatpush2.msra.mxu0 0.0
    %1685 = vmatprep.subr.mxu0 0.0
    %1686 = vmatpush2.msra.mxu0 0.0
    %1687 = vmatprep.subr.mxu0 0.0
    %1688 = vmatpush2.msra.mxu0 0.0
    %1689 = vmatprep.subr.mxu0 0.0
    %1690 = vmatpush2.msra.mxu0 0.0
    %1691 = vmatprep.subr.mxu0 0.0
    %1692 = vmatpush2.msra.mxu0 0.0
    %1693 = vmatprep.subr.mxu0 0.0
    %1694 = vmatpush2.msra.mxu0 0.0
    %1695 = vmatprep.subr.mxu0 0.0
    %1696 = vmatpush2.msra.mxu0 0.0
    %1697 = vmatprep.subr.mxu0 0.0
    %1698 = vmatpush2.msra.mxu0 0.0
    %1699 = vmatprep.subr.mxu0 0.0
    %1700 = vmatpush2.msra.mxu0 0.0
    %1701 = vmatprep.subr.mxu0 0.0
    %1702 = vmatpush2.msra.mxu0 0.0
    %1703 = vmatprep.subr.mxu0 0.0
    %1704 = vmatpush2.msra.mxu0 0.0
    %1705 = vmatprep.subr.mxu0 0.0
    %1706 = vmatpush2.msra.mxu0 0.0
    %1707 = vmatprep.subr.mxu0 0.0
    %1708 = vmatpush2.msra.mxu0 0.0
    %1709 = vmatprep.subr.mxu0 0.0
    %1710 = vmatpush2.msra.mxu0 0.0
    %1711 = vmatprep.subr.mxu0 0.0
    %1712 = vmatpush2.msra.mxu0 0.0
    %1713 = vmatprep.subr.mxu0 0.0
    %1714 = vmatpush2.msra.mxu0 0.0
    %1715 = vmatprep.mubr.f32.mxu0 0.0
    %1716 = vmatmul.mubr.f32.gmra.mxu0 %v1649
    %v1717 = vpop.f32.mrf.mxu0
    %v1718 = vadd.f32 0.0, %v1717
    %v1719 = vpop.f32.mrf.mxu0
    %1720 = vdwg.mxu0
    %1721 = vrot.lane.b32.xlu0 %v176, 40
    %v1722 = vpop.permute.xlu0 %1721
    %v1725 = vsel %vm204, %v1644, 0
    %1727 = vmatprep.subr.mxu0 0.0
    %1728 = vmatpush1.msra.mxu0 0.0
    %1729 = vmatprep.subr.mxu0 0.0
    %1730 = vmatpush1.msra.mxu0 0.0
    %1731 = vmatprep.subr.mxu0 0.0
    %1732 = vmatpush1.msra.mxu0 0.0
    %1733 = vmatprep.subr.mxu0 0.0
    %1734 = vmatpush1.msra.mxu0 0.0
    %1735 = vmatprep.subr.mxu0 0.0
    %1736 = vmatpush1.msra.mxu0 0.0
    %1737 = vmatprep.subr.mxu0 0.0
    %1738 = vmatpush1.msra.mxu0 0.0
    %1739 = vmatprep.subr.mxu0 0.0
    %1740 = vmatpush1.msra.mxu0 0.0
    %1741 = vmatprep.subr.mxu0 0.0
    %1742 = vmatpush1.msra.mxu0 0.0
    %1743 = vmatprep.subr.mxu0 0.0
    %1744 = vmatpush1.msra.mxu0 0.0
    %1745 = vmatprep.subr.mxu0 0.0
    %1746 = vmatpush1.msra.mxu0 0.0
    %1747 = vmatprep.subr.mxu0 0.0
    %1748 = vmatpush1.msra.mxu0 0.0
    %1749 = vmatprep.subr.mxu0 0.0
    %1750 = vmatpush1.msra.mxu0 0.0
    %1751 = vmatprep.subr.mxu0 0.0
    %1752 = vmatpush1.msra.mxu0 0.0
    %1753 = vmatprep.subr.mxu0 0.0
    %1754 = vmatpush1.msra.mxu0 0.0
    %1755 = vmatprep.subr.mxu0 0.0
    %1756 = vmatpush1.msra.mxu0 0.0
    %1757 = vmatprep.subr.mxu0 0.0
    %1758 = vmatpush1.msra.mxu0 %v1722
    %1759 = vmatprep.subr.mxu0 0.0
    %1760 = vmatpush2.msra.mxu0 0.0
    %1761 = vmatprep.subr.mxu0 0.0
    %1762 = vmatpush2.msra.mxu0 0.0
    %1763 = vmatprep.subr.mxu0 0.0
    %1764 = vmatpush2.msra.mxu0 0.0
    %1765 = vmatprep.subr.mxu0 0.0
    %1766 = vmatpush2.msra.mxu0 0.0
    %1767 = vmatprep.subr.mxu0 0.0
    %1768 = vmatpush2.msra.mxu0 0.0
    %1769 = vmatprep.subr.mxu0 0.0
    %1770 = vmatpush2.msra.mxu0 0.0
    %1771 = vmatprep.subr.mxu0 0.0
    %1772 = vmatpush2.msra.mxu0 0.0
    %1773 = vmatprep.subr.mxu0 0.0
    %1774 = vmatpush2.msra.mxu0 0.0
    %1775 = vmatprep.subr.mxu0 0.0
    %1776 = vmatpush2.msra.mxu0 0.0
    %1777 = vmatprep.subr.mxu0 0.0
    %1778 = vmatpush2.msra.mxu0 0.0
    %1779 = vmatprep.subr.mxu0 0.0
    %1780 = vmatpush2.msra.mxu0 0.0
    %1781 = vmatprep.subr.mxu0 0.0
    %1782 = vmatpush2.msra.mxu0 0.0
    %1783 = vmatprep.subr.mxu0 0.0
    %1784 = vmatpush2.msra.mxu0 0.0
    %1785 = vmatprep.subr.mxu0 0.0
    %1786 = vmatpush2.msra.mxu0 0.0
    %1787 = vmatprep.subr.mxu0 0.0
    %1788 = vmatpush2.msra.mxu0 0.0
    %1789 = vmatprep.subr.mxu0 0.0
    %1790 = vmatpush2.msra.mxu0 0.0
    %1791 = vmatprep.mubr.f32.mxu0 0.0
    %1792 = vmatmul.mubr.f32.gmra.mxu0 %v1725
    %v1793 = vpop.f32.mrf.mxu0
    %v1794 = vadd.f32 0.0, %v1793
    %v1795 = vpop.f32.mrf.mxu0
    %1796 = vdwg.mxu0
    %v1798 = vsel %vm204, %v1718, 0
    %v1801 = vsel %vm204, %v1794, 0
    %1803 = vmatprep.subr.mxu0 0.0
    %1804 = vmatpush1.msra.mxu0 0.0
    %1805 = vmatprep.subr.mxu0 0.0
    %1806 = vmatpush1.msra.mxu0 0.0
    %1807 = vmatprep.subr.mxu0 0.0
    %1808 = vmatpush1.msra.mxu0 0.0
    %1809 = vmatprep.subr.mxu0 0.0
    %1810 = vmatpush1.msra.mxu0 0.0
    %1811 = vmatprep.subr.mxu0 0.0
    %1812 = vmatpush1.msra.mxu0 0.0
    %1813 = vmatprep.subr.mxu0 0.0
    %1814 = vmatpush1.msra.mxu0 0.0
    %1815 = vmatprep.subr.mxu0 0.0
    %1816 = vmatpush1.msra.mxu0 0.0
    %1817 = vmatprep.subr.mxu0 0.0
    %1818 = vmatpush1.msra.mxu0 0.0
    %1819 = vmatprep.subr.mxu0 0.0
    %1820 = vmatpush1.msra.mxu0 0.0
    %1821 = vmatprep.subr.mxu0 0.0
    %1822 = vmatpush1.msra.mxu0 0.0
    %1823 = vmatprep.subr.mxu0 0.0
    %1824 = vmatpush1.msra.mxu0 0.0
    %1825 = vmatprep.subr.mxu0 0.0
    %1826 = vmatpush1.msra.mxu0 0.0
    %1827 = vmatprep.subr.mxu0 0.0
    %1828 = vmatpush1.msra.mxu0 0.0
    %1829 = vmatprep.subr.mxu0 0.0
    %1830 = vmatpush1.msra.mxu0 0.0
    %1831 = vmatprep.subr.mxu0 0.0
    %1832 = vmatpush1.msra.mxu0 0.0
    %1833 = vmatprep.subr.mxu0 0.0
    %1834 = vmatpush1.msra.mxu0 %v182
    %1835 = vmatprep.subr.mxu0 0.0
    %1836 = vmatpush2.msra.mxu0 0.0
    %1837 = vmatprep.subr.mxu0 0.0
    %1838 = vmatpush2.msra.mxu0 0.0
    %1839 = vmatprep.subr.mxu0 0.0
    %1840 = vmatpush2.msra.mxu0 0.0
    %1841 = vmatprep.subr.mxu0 0.0
    %1842 = vmatpush2.msra.mxu0 0.0
    %1843 = vmatprep.subr.mxu0 0.0
    %1844 = vmatpush2.msra.mxu0 0.0
    %1845 = vmatprep.subr.mxu0 0.0
    %1846 = vmatpush2.msra.mxu0 0.0
    %1847 = vmatprep.subr.mxu0 0.0
    %1848 = vmatpush2.msra.mxu0 0.0
    %1849 = vmatprep.subr.mxu0 0.0
    %1850 = vmatpush2.msra.mxu0 0.0
    %1851 = vmatprep.subr.mxu0 0.0
    %1852 = vmatpush2.msra.mxu0 0.0
    %1853 = vmatprep.subr.mxu0 0.0
    %1854 = vmatpush2.msra.mxu0 0.0
    %1855 = vmatprep.subr.mxu0 0.0
    %1856 = vmatpush2.msra.mxu0 0.0
    %1857 = vmatprep.subr.mxu0 0.0
    %1858 = vmatpush2.msra.mxu0 0.0
    %1859 = vmatprep.subr.mxu0 0.0
    %1860 = vmatpush2.msra.mxu0 0.0
    %1861 = vmatprep.subr.mxu0 0.0
    %1862 = vmatpush2.msra.mxu0 0.0
    %1863 = vmatprep.subr.mxu0 0.0
    %1864 = vmatpush2.msra.mxu0 0.0
    %1865 = vmatprep.subr.mxu0 0.0
    %1866 = vmatpush2.msra.mxu0 0.0
    %1867 = vmatprep.mubr.f32.mxu0 0.0
    %1868 = vmatmul.mubr.f32.gmra.mxu0 %v1798
    %v1869 = vpop.f32.mrf.mxu0
    %v1870 = vadd.f32 0.0, %v1869
    %v1871 = vpop.f32.mrf.mxu0
    %1872 = vmatprep.mubr.f32.mxu0 0.0
    %1873 = vmatmul.mubr.f32.gmra.mxu0 %v1801
    %v1874 = vpop.f32.mrf.mxu0
    %v1875 = vadd.f32 0.0, %v1874
    %v1876 = vpop.f32.mrf.mxu0
    %1877 = vdwg.mxu0
    %v1878 = vadd.f32 %v1461, %v1870
    %v1879 = vadd.f32 %v1462, %v1875
    %1880 = vst.msk [vmem:[#allocation10] sm:$0xff] %vm97, %v1878
    %1881 = vst.msk [vmem:[#allocation10 + $0x8] sm:$0xff] %vm97, %v1879
    // Predicated region
    $region46: #{tpu_custom_call.1} parent=1 // pred_check
      _
    $region47: #{tpu_custom_call.1} parent=1 // pred_check_branch
      %1883 = sbr.rel (0) target = $region49
    $region48: #{tpu_custom_call.1} parent=1 // pred_region
      %s1885 = ssub.s32 256, 256
      %1886 = vsyncadd [#allocation4], %s1885
      %s1887 = sshll.u32 [#allocation10], 4
      %s1888 = int_to_ptr.vmem [resolvable:$true] %s1887
      %1893 = dma.vmem_to_hbm [thread:$0]  %s1888, 256, %s7, [#allocation4], 128, 128, 8
    $region49: #{tpu_custom_call.1} parent=1 // pred_fallthru
      _
    // Predicated region
    $region50: #{tpu_custom_call.1} parent=1 // pred_check
      _
    $region51: #{tpu_custom_call.1} parent=1 // pred_check_branch
      %1895 = sbr.rel (0) target = $region53
    $region52: #{tpu_custom_call.1} parent=1 // pred_region
      %1896 = dma.done [#allocation4], 256
    $region53: #{tpu_custom_call.1} parent=1 // pred_fallthru
      _
    %1897 = vsyncpa [#allocation3], 1
    %1898 = vsyncpa [#allocation6], 1
    %1899 = vsyncpa [#allocation9], 1
    %1900 = vsyncpa [#allocation4], 1

</llo_original>
